<compile_context>
chip_gen: v6e
topology: v6e:2x2x1
jax: 0.10.0
libtpu: 0.0.40
codegen_flags: <defaults>
</compile_context>

<pallas_src>
import jax
import jax.numpy as jnp
from jax.experimental import pallas as pl
from jax.experimental.pallas import tpu as pltpu


def _round_up(x, m):
    return ((x + m - 1) // m) * m


def _rapp_kernel(x_ref, w1_ref, wmid_ref, bpack_ref, w8_ref, b8_ref, o_ref):
    """One batch tile of the fused RaPP autoencoder forward pass.

    x_ref    : (TILE_B, in_dim)  input tile, natural row-major layout
    w1_ref   : (4, in_dim)       encoder layer-1 weight (PyTorch (out, in))
    wmid_ref : (6, 4, 4, 1)      layers 2..7, zero-padded to 4x4, bcast dim
    bpack_ref: (4, 7)            biases b1..b7 (zero-padded), one column/layer
    w8_ref   : (in_dim, 4)       decoder output weight
    b8_ref   : (in_dim, 1)       decoder output bias as a column
    o_ref    : (in_dim, TILE_B)  output tile, batch on the lane axis
    """
    b = bpack_ref[...]                                # (4, 7)

    # ---- layer 1 (in_dim -> 4): MXU, contract in_dim on both operands ----
    # result is (4, TILE_B): batch lands on the lane axis for all later layers.
    h = jax.lax.dot_general(
        w1_ref[...], x_ref[...],
        dimension_numbers=(((1,), (1,)), ((), ())),
        preferred_element_type=jnp.float32,
        precision=jax.lax.Precision.HIGHEST)          # (4, TILE_B)
    h = jnp.maximum(h + b[:, 0:1], 0.0)               # bias fold + ReLU

    # ---- layers 2..7 (<= 4x4): VPU lane-broadcast FMA + sublane reduce ----
    # W_l @ h == sum_i W_l[o, i] * h[i, :]   (no MXU round-trip)
    relu_flags = (True, True, False, True, True, True)   # no ReLU after latent
    for l in range(6):
        w = wmid_ref[l]                               # (4, 4, 1): (out, in, 1)
        h = jnp.sum(w * h[None, :, :], axis=1)        # (4, TILE_B)
        h = h + b[:, l + 1:l + 2]
        if relu_flags[l]:
            h = jnp.maximum(h, 0.0)

    # ---- layer 8 (4 -> in_dim): MXU, lane-dense unmasked store ----
    out = jnp.dot(w8_ref[...], h,
                  preferred_element_type=jnp.float32,
                  precision=jax.lax.Precision.HIGHEST) + b8_ref[...]
    o_ref[...] = out.astype(o_ref.dtype)


def rapp_forward(x, params, *, tile_b=1024):
    """RaPP forward pass.

    x      : (batch, in_dim) float32
    params : list of 8 (W, b) pairs in PyTorch nn.Linear layout, W = (out, in)
    """
    batch, in_dim = x.shape
    w1, b1 = params[0]
    w8, b8 = params[7]
    mids = params[1:7]                                # layers 2..7

    # Zero-pad the tiny interior layers to a uniform 4x4 shape.  This is exact:
    # padded latent rows come from zero weight rows + zero bias (= 0) and are
    # consumed by zero weight columns in the next layer.
    def pad_w(w):
        o, i = w.shape
        return jnp.zeros((4, 4), jnp.float32).at[:o, :i].set(w)

    def pad_b(bb):
        return jnp.zeros((4,), jnp.float32).at[: bb.shape[0]].set(bb)

    wmid = jnp.stack([pad_w(w) for w, _ in mids], axis=0)[..., None]       # (6,4,4,1)
    bpack = jnp.stack([pad_b(b1)] + [pad_b(bb) for _, bb in mids], axis=1)  # (4,7)
    b8col = b8.reshape(in_dim, 1).astype(jnp.float32)

    x32 = x.astype(jnp.float32)                       # natural (batch, in_dim)
    tile_b = min(tile_b, _round_up(max(batch, 1), 128))
    assert tile_b % 128 == 0, "tile_b must be a multiple of 128"
    padded_b = _round_up(batch, tile_b)
    if padded_b != batch:
        x32 = jnp.pad(x32, ((0, padded_b - batch), (0, 0)))
    num_tiles = padded_b // tile_b

    grid_spec = pltpu.PrefetchScalarGridSpec(
        num_scalar_prefetch=0,
        grid=(num_tiles,),
        in_specs=[
            # batch-tiled input, natural layout, pipelined (contiguous HBM slab)
            pl.BlockSpec((tile_b, in_dim), lambda i: (i, 0)),
            # resident parameter buffers (constant block index -> DMA'd once)
            pl.BlockSpec((4, in_dim), lambda i: (0, 0)),
            pl.BlockSpec((6, 4, 4, 1), lambda i: (0, 0, 0, 0)),
            pl.BlockSpec((4, 7), lambda i: (0, 0)),
            pl.BlockSpec((in_dim, 4), lambda i: (0, 0)),
            pl.BlockSpec((in_dim, 1), lambda i: (0, 0)),
        ],
        # lane-dense output: batch on lanes -> unmasked dense stores
        out_specs=pl.BlockSpec((in_dim, tile_b), lambda i: (0, i)),
    )

    outT = pl.pallas_call(
        _rapp_kernel,
        out_shape=jax.ShapeDtypeStruct((in_dim, padded_b), jnp.float32),
        grid_spec=grid_spec,
        compiler_params=pltpu.CompilerParams(
            dimension_semantics=("parallel",)),
    )(x32, w1.astype(jnp.float32), wmid, bpack, w8.astype(jnp.float32), b8col)

    # Layout plumbing only: present the lane-dense slab back as (batch, in_dim).
    return outT[:, :batch].T


def init_rapp_params(in_dim, key):
    """Synthetic init matching nn.Linear (weight (out, in), U(-1/sqrt(fan_in), ...))."""
    dims = [
        (4, in_dim), (4, 4), (4, 4), (2, 4),       # encoder
        (4, 2), (4, 4), (4, 4), (in_dim, 4),       # decoder
    ]
    params = []
    for (fan_out, fan_in) in dims:
        key, kw, kb = jax.random.split(key, 3)
        bound = 1.0 / float(fan_in) ** 0.5
        w = jax.random.uniform(kw, (fan_out, fan_in), jnp.float32, -bound, bound)
        b = jax.random.uniform(kb, (fan_out,), jnp.float32, -bound, bound)
        params.append((w, b))
    return params


def rapp_reference(x, params):
    """Pure-JAX reference mirroring the PyTorch forward (full-f32 matmuls)."""
    h = x
    relu_after = [True, True, True, False, True, True, True, False]
    for (w, b), do_relu in zip(params, relu_after):
        h = jnp.dot(h, w.T, precision=jax.lax.Precision.HIGHEST) + b
        if do_relu:
            h = jnp.maximum(h, 0.0)
    return h


if __name__ == "__main__":
    key = jax.random.PRNGKey(0)
    batch, in_dim = 200, 32                      # small, non-multiple-of-tile batch

    key, kx = jax.random.split(key)
    x = jax.random.normal(kx, (batch, in_dim), jnp.float32)
    params = init_rapp_params(in_dim, key)
    ref = rapp_reference(x, params)

    # tile_b=128 -> 2 grid steps: exercises the batch grid, pipelining, padding.
    out_small = jax.block_until_ready(rapp_forward(x, params, tile_b=128))
    assert out_small.shape == (batch, in_dim)
    assert jnp.allclose(out_small, ref, atol=5e-5, rtol=5e-5), "mismatch (tile_b=128)"

    # Default (large) tile path: single clamped tile covering the whole batch.
    out_big = jax.block_until_ready(rapp_forward(x, params))
    assert out_big.shape == (batch, in_dim)
    assert jnp.allclose(out_big, ref, atol=5e-5, rtol=5e-5), "mismatch (default tile)"

    print("KERNEL_OK")
</pallas_src>

<mosaic_0001>
module attributes {stable_mosaic.version = 11 : i64} {
  func.func @_rapp_kernel(%arg0: i32, %arg1: memref<128x32xf32, #tpu.memory_space<vmem>>, %arg2: memref<4x32xf32, #tpu.memory_space<vmem>>, %arg3: memref<6x4x4x1xf32, #tpu.memory_space<vmem>>, %arg4: memref<4x7xf32, #tpu.memory_space<vmem>>, %arg5: memref<32x4xf32, #tpu.memory_space<vmem>>, %arg6: memref<32x1xf32, #tpu.memory_space<vmem>>, %arg7: memref<32x128xf32, #tpu.memory_space<vmem>>) attributes {dimension_semantics = [#tpu.dimension_semantics<parallel>], iteration_bounds = array<i64: 2>, scalar_prefetch = 0 : i64, scratch_operands = 0 : i64, tpu.core_type = #tpu.core_type<tc>, window_params = [{transform_indices = @transform_0, window_bounds = array<i64: 128, 32>}, {pipeline_mode = #tpu.pipeline_mode<synchronous>, transform_indices = @transform_1, window_bounds = array<i64: 4, 32>}, {pipeline_mode = #tpu.pipeline_mode<synchronous>, transform_indices = @transform_2, window_bounds = array<i64: 6, 4, 4, 1>}, {pipeline_mode = #tpu.pipeline_mode<synchronous>, transform_indices = @transform_3, window_bounds = array<i64: 4, 7>}, {pipeline_mode = #tpu.pipeline_mode<synchronous>, transform_indices = @transform_4, window_bounds = array<i64: 32, 4>}, {pipeline_mode = #tpu.pipeline_mode<synchronous>, transform_indices = @transform_5, window_bounds = array<i64: 32, 1>}, {transform_indices = @transform_6, window_bounds = array<i64: 32, 128>}]} {
    %c0 = arith.constant 0 : index
    %c0_0 = arith.constant 0 : index
    %0 = vector.load %arg4[%c0, %c0_0] : memref<4x7xf32, #tpu.memory_space<vmem>>, vector<4x7xf32>
    %c0_1 = arith.constant 0 : index
    %c0_2 = arith.constant 0 : index
    %1 = vector.load %arg2[%c0_1, %c0_2] : memref<4x32xf32, #tpu.memory_space<vmem>>, vector<4x32xf32>
    %c0_3 = arith.constant 0 : index
    %c0_4 = arith.constant 0 : index
    %2 = vector.load %arg1[%c0_3, %c0_4] : memref<128x32xf32, #tpu.memory_space<vmem>>, vector<128x32xf32>
    %cst = arith.constant dense<0.000000e+00> : vector<4x128xf32>
    %3 = tpu.matmul %1, %2, %cst {dimension_numbers = #tpu.dot_dimension_numbers<[1], [1], [0], [0], [0, 0, 1, 0], [], []>, precision = #tpu.contract_precision<fp32>} : vector<4x32xf32>, vector<128x32xf32>, vector<4x128xf32> -> vector<4x128xf32>
    %4 = vector.extract_strided_slice %0 {offsets = [0, 0], sizes = [4, 1], strides = [1, 1]} : vector<4x7xf32> to vector<4x1xf32>
    %5 = vector.broadcast %4 : vector<4x1xf32> to vector<4x128xf32>
    %6 = arith.addf %3, %5 : vector<4x128xf32>
    %cst_5 = arith.constant 0.000000e+00 : f32
    %7 = vector.broadcast %cst_5 : f32 to vector<4x128xf32>
    %8 = arith.maximumf %6, %7 : vector<4x128xf32>
    %c0_6 = arith.constant 0 : index
    %c0_7 = arith.constant 0 : index
    %c0_8 = arith.constant 0 : index
    %c0_9 = arith.constant 0 : index
    %9 = vector.load %arg3[%c0_6, %c0_7, %c0_8, %c0_9] : memref<6x4x4x1xf32, #tpu.memory_space<vmem>>, vector<1x4x4x1xf32>
    %10 = vector.shape_cast %9 : vector<1x4x4x1xf32> to vector<4x4x1xf32>
    %11 = vector.shape_cast %8 : vector<4x128xf32> to vector<1x4x128xf32>
    %12 = vector.broadcast %10 : vector<4x4x1xf32> to vector<4x4x128xf32>
    %13 = vector.broadcast %11 : vector<1x4x128xf32> to vector<4x4x128xf32>
    %14 = arith.mulf %12, %13 : vector<4x4x128xf32>
    %cst_10 = arith.constant dense<0.000000e+00> : vector<4x128xf32>
    %15 = vector.multi_reduction <add>, %14, %cst_10 [1] : vector<4x4x128xf32> to vector<4x128xf32>
    %16 = vector.extract_strided_slice %0 {offsets = [0, 1], sizes = [4, 1], strides = [1, 1]} : vector<4x7xf32> to vector<4x1xf32>
    %17 = vector.broadcast %16 : vector<4x1xf32> to vector<4x128xf32>
    %18 = arith.addf %15, %17 : vector<4x128xf32>
    %cst_11 = arith.constant 0.000000e+00 : f32
    %19 = vector.broadcast %cst_11 : f32 to vector<4x128xf32>
    %20 = arith.maximumf %18, %19 : vector<4x128xf32>
    %c1 = arith.constant 1 : index
    %c0_12 = arith.constant 0 : index
    %c0_13 = arith.constant 0 : index
    %c0_14 = arith.constant 0 : index
    %21 = vector.load %arg3[%c1, %c0_12, %c0_13, %c0_14] : memref<6x4x4x1xf32, #tpu.memory_space<vmem>>, vector<1x4x4x1xf32>
    %22 = vector.shape_cast %21 : vector<1x4x4x1xf32> to vector<4x4x1xf32>
    %23 = vector.shape_cast %20 : vector<4x128xf32> to vector<1x4x128xf32>
    %24 = vector.broadcast %22 : vector<4x4x1xf32> to vector<4x4x128xf32>
    %25 = vector.broadcast %23 : vector<1x4x128xf32> to vector<4x4x128xf32>
    %26 = arith.mulf %24, %25 : vector<4x4x128xf32>
    %cst_15 = arith.constant dense<0.000000e+00> : vector<4x128xf32>
    %27 = vector.multi_reduction <add>, %26, %cst_15 [1] : vector<4x4x128xf32> to vector<4x128xf32>
    %28 = vector.extract_strided_slice %0 {offsets = [0, 2], sizes = [4, 1], strides = [1, 1]} : vector<4x7xf32> to vector<4x1xf32>
    %29 = vector.broadcast %28 : vector<4x1xf32> to vector<4x128xf32>
    %30 = arith.addf %27, %29 : vector<4x128xf32>
    %cst_16 = arith.constant 0.000000e+00 : f32
    %31 = vector.broadcast %cst_16 : f32 to vector<4x128xf32>
    %32 = arith.maximumf %30, %31 : vector<4x128xf32>
    %c2 = arith.constant 2 : index
    %c0_17 = arith.constant 0 : index
    %c0_18 = arith.constant 0 : index
    %c0_19 = arith.constant 0 : index
    %33 = vector.load %arg3[%c2, %c0_17, %c0_18, %c0_19] : memref<6x4x4x1xf32, #tpu.memory_space<vmem>>, vector<1x4x4x1xf32>
    %34 = vector.shape_cast %33 : vector<1x4x4x1xf32> to vector<4x4x1xf32>
    %35 = vector.shape_cast %32 : vector<4x128xf32> to vector<1x4x128xf32>
    %36 = vector.broadcast %34 : vector<4x4x1xf32> to vector<4x4x128xf32>
    %37 = vector.broadcast %35 : vector<1x4x128xf32> to vector<4x4x128xf32>
    %38 = arith.mulf %36, %37 : vector<4x4x128xf32>
    %cst_20 = arith.constant dense<0.000000e+00> : vector<4x128xf32>
    %39 = vector.multi_reduction <add>, %38, %cst_20 [1] : vector<4x4x128xf32> to vector<4x128xf32>
    %40 = vector.extract_strided_slice %0 {offsets = [0, 3], sizes = [4, 1], strides = [1, 1]} : vector<4x7xf32> to vector<4x1xf32>
    %41 = vector.broadcast %40 : vector<4x1xf32> to vector<4x128xf32>
    %42 = arith.addf %39, %41 : vector<4x128xf32>
    %c3 = arith.constant 3 : index
    %c0_21 = arith.constant 0 : index
    %c0_22 = arith.constant 0 : index
    %c0_23 = arith.constant 0 : index
    %43 = vector.load %arg3[%c3, %c0_21, %c0_22, %c0_23] : memref<6x4x4x1xf32, #tpu.memory_space<vmem>>, vector<1x4x4x1xf32>
    %44 = vector.shape_cast %43 : vector<1x4x4x1xf32> to vector<4x4x1xf32>
    %45 = vector.shape_cast %42 : vector<4x128xf32> to vector<1x4x128xf32>
    %46 = vector.broadcast %44 : vector<4x4x1xf32> to vector<4x4x128xf32>
    %47 = vector.broadcast %45 : vector<1x4x128xf32> to vector<4x4x128xf32>
    %48 = arith.mulf %46, %47 : vector<4x4x128xf32>
    %cst_24 = arith.constant dense<0.000000e+00> : vector<4x128xf32>
    %49 = vector.multi_reduction <add>, %48, %cst_24 [1] : vector<4x4x128xf32> to vector<4x128xf32>
    %50 = vector.extract_strided_slice %0 {offsets = [0, 4], sizes = [4, 1], strides = [1, 1]} : vector<4x7xf32> to vector<4x1xf32>
    %51 = vector.broadcast %50 : vector<4x1xf32> to vector<4x128xf32>
    %52 = arith.addf %49, %51 : vector<4x128xf32>
    %cst_25 = arith.constant 0.000000e+00 : f32
    %53 = vector.broadcast %cst_25 : f32 to vector<4x128xf32>
    %54 = arith.maximumf %52, %53 : vector<4x128xf32>
    %c4 = arith.constant 4 : index
    %c0_26 = arith.constant 0 : index
    %c0_27 = arith.constant 0 : index
    %c0_28 = arith.constant 0 : index
    %55 = vector.load %arg3[%c4, %c0_26, %c0_27, %c0_28] : memref<6x4x4x1xf32, #tpu.memory_space<vmem>>, vector<1x4x4x1xf32>
    %56 = vector.shape_cast %55 : vector<1x4x4x1xf32> to vector<4x4x1xf32>
    %57 = vector.shape_cast %54 : vector<4x128xf32> to vector<1x4x128xf32>
    %58 = vector.broadcast %56 : vector<4x4x1xf32> to vector<4x4x128xf32>
    %59 = vector.broadcast %57 : vector<1x4x128xf32> to vector<4x4x128xf32>
    %60 = arith.mulf %58, %59 : vector<4x4x128xf32>
    %cst_29 = arith.constant dense<0.000000e+00> : vector<4x128xf32>
    %61 = vector.multi_reduction <add>, %60, %cst_29 [1] : vector<4x4x128xf32> to vector<4x128xf32>
    %62 = vector.extract_strided_slice %0 {offsets = [0, 5], sizes = [4, 1], strides = [1, 1]} : vector<4x7xf32> to vector<4x1xf32>
    %63 = vector.broadcast %62 : vector<4x1xf32> to vector<4x128xf32>
    %64 = arith.addf %61, %63 : vector<4x128xf32>
    %cst_30 = arith.constant 0.000000e+00 : f32
    %65 = vector.broadcast %cst_30 : f32 to vector<4x128xf32>
    %66 = arith.maximumf %64, %65 : vector<4x128xf32>
    %c5 = arith.constant 5 : index
    %c0_31 = arith.constant 0 : index
    %c0_32 = arith.constant 0 : index
    %c0_33 = arith.constant 0 : index
    %67 = vector.load %arg3[%c5, %c0_31, %c0_32, %c0_33] : memref<6x4x4x1xf32, #tpu.memory_space<vmem>>, vector<1x4x4x1xf32>
    %68 = vector.shape_cast %67 : vector<1x4x4x1xf32> to vector<4x4x1xf32>
    %69 = vector.shape_cast %66 : vector<4x128xf32> to vector<1x4x128xf32>
    %70 = vector.broadcast %68 : vector<4x4x1xf32> to vector<4x4x128xf32>
    %71 = vector.broadcast %69 : vector<1x4x128xf32> to vector<4x4x128xf32>
    %72 = arith.mulf %70, %71 : vector<4x4x128xf32>
    %cst_34 = arith.constant dense<0.000000e+00> : vector<4x128xf32>
    %73 = vector.multi_reduction <add>, %72, %cst_34 [1] : vector<4x4x128xf32> to vector<4x128xf32>
    %74 = vector.extract_strided_slice %0 {offsets = [0, 6], sizes = [4, 1], strides = [1, 1]} : vector<4x7xf32> to vector<4x1xf32>
    %75 = vector.broadcast %74 : vector<4x1xf32> to vector<4x128xf32>
    %76 = arith.addf %73, %75 : vector<4x128xf32>
    %cst_35 = arith.constant 0.000000e+00 : f32
    %77 = vector.broadcast %cst_35 : f32 to vector<4x128xf32>
    %78 = arith.maximumf %76, %77 : vector<4x128xf32>
    %c0_36 = arith.constant 0 : index
    %c0_37 = arith.constant 0 : index
    %79 = vector.load %arg5[%c0_36, %c0_37] : memref<32x4xf32, #tpu.memory_space<vmem>>, vector<32x4xf32>
    %cst_38 = arith.constant dense<0.000000e+00> : vector<32x128xf32>
    %80 = tpu.matmul %79, %78, %cst_38 {dimension_numbers = #tpu.dot_dimension_numbers<[1], [0], [0], [1], [0, 0, 1, 1], [], []>, precision = #tpu.contract_precision<fp32>} : vector<32x4xf32>, vector<4x128xf32>, vector<32x128xf32> -> vector<32x128xf32>
    %c0_39 = arith.constant 0 : index
    %c0_40 = arith.constant 0 : index
    %81 = vector.load %arg6[%c0_39, %c0_40] : memref<32x1xf32, #tpu.memory_space<vmem>>, vector<32x1xf32>
    %82 = vector.broadcast %81 : vector<32x1xf32> to vector<32x128xf32>
    %83 = arith.addf %80, %82 : vector<32x128xf32>
    %c0_41 = arith.constant 0 : index
    %c0_42 = arith.constant 0 : index
    %84 = vector.load %arg7[%c0_41, %c0_42] : memref<32x128xf32, #tpu.memory_space<vmem>>, vector<32x128xf32>
    tpu.vector_store %arg7[%c0_41, %c0_42], %83 {strides = array<i32>} : memref<32x128xf32, #tpu.memory_space<vmem>>, vector<32x128xf32>,
    return
  }
  func.func @transform_0(%arg0: i32) -> (i32, i32) {
    %c0_i32 = arith.constant 0 : i32
    %c0_i32_0 = arith.constant 0 : i32
    return %arg0, %c0_i32 : i32, i32
  }
  func.func @transform_1(%arg0: i32) -> (i32, i32) {
    %c0_i32 = arith.constant 0 : i32
    %c0_i32_0 = arith.constant 0 : i32
    %c0_i32_1 = arith.constant 0 : i32
    return %c0_i32, %c0_i32_0 : i32, i32
  }
  func.func @transform_2(%arg0: i32) -> (i32, i32, i32, i32) {
    %c0_i32 = arith.constant 0 : i32
    %c0_i32_0 = arith.constant 0 : i32
    %c0_i32_1 = arith.constant 0 : i32
    %c0_i32_2 = arith.constant 0 : i32
    %c0_i32_3 = arith.constant 0 : i32
    return %c0_i32, %c0_i32_0, %c0_i32_1, %c0_i32_2 : i32, i32, i32, i32
  }
  func.func @transform_3(%arg0: i32) -> (i32, i32) {
    %c0_i32 = arith.constant 0 : i32
    %c0_i32_0 = arith.constant 0 : i32
    %c0_i32_1 = arith.constant 0 : i32
    return %c0_i32, %c0_i32_0 : i32, i32
  }
  func.func @transform_4(%arg0: i32) -> (i32, i32) {
    %c0_i32 = arith.constant 0 : i32
    %c0_i32_0 = arith.constant 0 : i32
    %c0_i32_1 = arith.constant 0 : i32
    return %c0_i32, %c0_i32_0 : i32, i32
  }
  func.func @transform_5(%arg0: i32) -> (i32, i32) {
    %c0_i32 = arith.constant 0 : i32
    %c0_i32_0 = arith.constant 0 : i32
    %c0_i32_1 = arith.constant 0 : i32
    return %c0_i32, %c0_i32_0 : i32, i32
  }
  func.func @transform_6(%arg0: i32) -> (i32, i32) {
    %c0_i32 = arith.constant 0 : i32
    %c0_i32_0 = arith.constant 0 : i32
    return %c0_i32, %arg0 : i32, i32
  }
}

</mosaic_0001>

<llo_original>
// kernel: tpu_custom_call.1
$region0: #{tpu_custom_call.1}
  #allocation0 [shape = 'u32[]', space=smem, size = 0x4, offset = 0x4, fixed_abs, tag = 'smem constant byte address 0x4 - core index']
  #allocation1 [shape = 'u32[144,128]{1,0:T(1,128)}', space=vmem, size = 0x12000, scoped, tag = 'internal scratch']
  %s0 = inlined_call_operand.vmem [shape: f32[256,32], index: 0, kind: input, shape index: {}]
  %s1 = inlined_call_operand.vmem [shape: f32[4,32], index: 1, kind: input, shape index: {}]
  %s2 = inlined_call_operand.vmem [shape: f32[6,4,4,1], index: 2, kind: input, shape index: {}]
  %s3 = inlined_call_operand.vmem [shape: f32[4,7], index: 3, kind: input, shape index: {}]
  %s4 = inlined_call_operand.vmem [shape: f32[32,4], index: 4, kind: input, shape index: {}]
  %s5 = inlined_call_operand.vmem [shape: f32[32,1], index: 5, kind: input, shape index: {}]
  %s6 = inlined_call_operand.hbm [shape: f32[32,256], index: 6, kind: output, shape index: {}]
  %s7 = sld [smem:[#allocation0]]
  $region57: #{tpu_custom_call.1} parent=0
    _
  %s9 = ssub.s32 1, %s7
  %s10 = scalar_select 0, %s9, %s7
  $region1: #{tpu_custom_call.1} parent=0
    #allocation2 [shape = 'u8[32768]{0}', space=vmem, size = 0x8000, scoped, tag = 'output window, operand 0']
    #allocation3 [shape = 's32[2]{0}', space=sflag, size = 0x8, scoped, tag = 'scoped memory for tpu_custom_call.1']
    %11 = vsyncpa [#allocation3], 0
    %s12 = scalar_lea.sflag [#allocation3], 1
    %13 = vsyncpa %s12, 0
    loop: start=0, step=1, limit=4
    $region2: #{tpu_custom_call.1} parent=1 // loop_pre_header
      _
    $region3: #{tpu_custom_call.1} parent=1 // loop_header
      %s15 = sphi 0, %s19
      %p16 = scmp.ge.s32.totalorder %s15, 4
      %s25 = sphi 0, %s27
      %s28 = sphi 0, %s25
      %s29 = sphi 0, %s28
      %s45 = sphi 0, %s29
      %s49 = sphi 0, %s49
      %s51 = sphi 0, %s49
      %s52 = sphi 0, %s51
      %s66 = sphi 0, %s52
      %s70 = sphi 0, %s70
      %s72 = sphi 0, %s70
      %s73 = sphi 0, %s72
      %s87 = sphi 0, %s73
      %s91 = sphi 0, %s91
      %s93 = sphi 0, %s91
      %s94 = sphi 0, %s93
      %s108 = sphi 0, %s94
      %s112 = sphi 0, %s112
      %s114 = sphi 0, %s112
      %s115 = sphi 0, %s114
      %s129 = sphi 0, %s115
      %s133 = sphi 0, %s133
      %s135 = sphi 0, %s133
      %s136 = sphi 0, %s135
      %s150 = sphi 0, %s136
      %s156 = sphi 0, %s158
      %s159 = sphi 0, %s156
      %s160 = sphi 0, %s159
      %s176 = sphi 0, %s160
    $region4: #{tpu_custom_call.1} parent=1 // loop_header_branch
      %18 = sbr.rel (%p16) target = $region8
    $region5: #{tpu_custom_call.1} parent=1 // loop_body
      %s20 = ssub.s32 %s15, 1
      %s21 = ssub.s32 %s15, 2
      %s22 = sadd.s32 %s15, 1
      %s23 = ssub.s32 %s15, %s22
      %p24 = scmp.eq.s32.totalorder %s23, 0
      %s26 = sadd.s32 %s25, 1
      %s27 = scalar_select %p24, %s25, %s26
      %p30 = pneg %p24
      %p31 = scmp.eq.s32.totalorder %s15, 1
      %p32 = por %p30, %p31
      %p33 = scmp.ne.s32.totalorder %s25, %s28
      %p34 = scmp.eq.s32.totalorder %s15, 0
      %p35 = por %p33, %p34
      %p36 = scmp.ne.s32.totalorder %s25, %s28
      %p37 = scmp.eq.s32.totalorder %s20, 1
      %p38 = por %p36, %p37
      %p39 = scmp.ne.s32.totalorder %s28, %s29
      %p40 = scmp.eq.s32.totalorder %s20, 0
      %p41 = por %p39, %p40
      %p42 = scmp.ne.s32.totalorder %s28, %s29
      %p43 = scmp.eq.s32.totalorder %s21, 1
      %p44 = por %p42, %p43
      %p46 = scmp.ne.s32.totalorder %s29, %s45
      %p47 = scmp.eq.s32.totalorder %s21, 0
      %p48 = por %p46, %p47
      %s50 = sadd.s32 %s49, 1
      %p53 = scmp.eq.s32.totalorder %s15, 1
      %p54 = scmp.ne.s32.totalorder %s49, %s51
      %p55 = scmp.eq.s32.totalorder %s15, 0
      %p56 = por %p54, %p55
      %p57 = scmp.ne.s32.totalorder %s49, %s51
      %p58 = scmp.eq.s32.totalorder %s20, 1
      %p59 = por %p57, %p58
      %p60 = scmp.ne.s32.totalorder %s51, %s52
      %p61 = scmp.eq.s32.totalorder %s20, 0
      %p62 = por %p60, %p61
      %p63 = scmp.ne.s32.totalorder %s51, %s52
      %p64 = scmp.eq.s32.totalorder %s21, 1
      %p65 = por %p63, %p64
      %p67 = scmp.ne.s32.totalorder %s52, %s66
      %p68 = scmp.eq.s32.totalorder %s21, 0
      %p69 = por %p67, %p68
      %s71 = sadd.s32 %s70, 1
      %p74 = scmp.eq.s32.totalorder %s15, 1
      %p75 = scmp.ne.s32.totalorder %s70, %s72
      %p76 = scmp.eq.s32.totalorder %s15, 0
      %p77 = por %p75, %p76
      %p78 = scmp.ne.s32.totalorder %s70, %s72
      %p79 = scmp.eq.s32.totalorder %s20, 1
      %p80 = por %p78, %p79
      %p81 = scmp.ne.s32.totalorder %s72, %s73
      %p82 = scmp.eq.s32.totalorder %s20, 0
      %p83 = por %p81, %p82
      %p84 = scmp.ne.s32.totalorder %s72, %s73
      %p85 = scmp.eq.s32.totalorder %s21, 1
      %p86 = por %p84, %p85
      %p88 = scmp.ne.s32.totalorder %s73, %s87
      %p89 = scmp.eq.s32.totalorder %s21, 0
      %p90 = por %p88, %p89
      %s92 = sadd.s32 %s91, 1
      %p95 = scmp.eq.s32.totalorder %s15, 1
      %p96 = scmp.ne.s32.totalorder %s91, %s93
      %p97 = scmp.eq.s32.totalorder %s15, 0
      %p98 = por %p96, %p97
      %p99 = scmp.ne.s32.totalorder %s91, %s93
      %p100 = scmp.eq.s32.totalorder %s20, 1
      %p101 = por %p99, %p100
      %p102 = scmp.ne.s32.totalorder %s93, %s94
      %p103 = scmp.eq.s32.totalorder %s20, 0
      %p104 = por %p102, %p103
      %p105 = scmp.ne.s32.totalorder %s93, %s94
      %p106 = scmp.eq.s32.totalorder %s21, 1
      %p107 = por %p105, %p106
      %p109 = scmp.ne.s32.totalorder %s94, %s108
      %p110 = scmp.eq.s32.totalorder %s21, 0
      %p111 = por %p109, %p110
      %s113 = sadd.s32 %s112, 1
      %p116 = scmp.eq.s32.totalorder %s15, 1
      %p117 = scmp.ne.s32.totalorder %s112, %s114
      %p118 = scmp.eq.s32.totalorder %s15, 0
      %p119 = por %p117, %p118
      %p120 = scmp.ne.s32.totalorder %s112, %s114
      %p121 = scmp.eq.s32.totalorder %s20, 1
      %p122 = por %p120, %p121
      %p123 = scmp.ne.s32.totalorder %s114, %s115
      %p124 = scmp.eq.s32.totalorder %s20, 0
      %p125 = por %p123, %p124
      %p126 = scmp.ne.s32.totalorder %s114, %s115
      %p127 = scmp.eq.s32.totalorder %s21, 1
      %p128 = por %p126, %p127
      %p130 = scmp.ne.s32.totalorder %s115, %s129
      %p131 = scmp.eq.s32.totalorder %s21, 0
      %p132 = por %p130, %p131
      %s134 = sadd.s32 %s133, 1
      %p137 = scmp.eq.s32.totalorder %s15, 1
      %p138 = scmp.ne.s32.totalorder %s133, %s135
      %p139 = scmp.eq.s32.totalorder %s15, 0
      %p140 = por %p138, %p139
      %p141 = scmp.ne.s32.totalorder %s133, %s135
      %p142 = scmp.eq.s32.totalorder %s20, 1
      %p143 = por %p141, %p142
      %p144 = scmp.ne.s32.totalorder %s135, %s136
      %p145 = scmp.eq.s32.totalorder %s20, 0
      %p146 = por %p144, %p145
      %p147 = scmp.ne.s32.totalorder %s135, %s136
      %p148 = scmp.eq.s32.totalorder %s21, 1
      %p149 = por %p147, %p148
      %p151 = scmp.ne.s32.totalorder %s136, %s150
      %p152 = scmp.eq.s32.totalorder %s21, 0
      %p153 = por %p151, %p152
      %s154 = ssub.s32 %s15, %s22
      %p155 = scmp.eq.s32.totalorder %s154, 0
      %s157 = sadd.s32 %s156, 1
      %s158 = scalar_select %p155, %s156, %s157
      %p161 = pneg %p155
      %p162 = scmp.eq.s32.totalorder %s15, 1
      %p163 = por %p161, %p162
      %p164 = scmp.ne.s32.totalorder %s156, %s159
      %p165 = scmp.eq.s32.totalorder %s15, 0
      %p166 = por %p164, %p165
      %p167 = scmp.ne.s32.totalorder %s156, %s159
      %p168 = scmp.eq.s32.totalorder %s20, 1
      %p169 = por %p167, %p168
      %p170 = scmp.ne.s32.totalorder %s159, %s160
      %p171 = scmp.eq.s32.totalorder %s20, 0
      %p172 = por %p170, %p171
      %p173 = scmp.ne.s32.totalorder %s159, %s160
      %p174 = scmp.eq.s32.totalorder %s21, 1
      %p175 = por %p173, %p174
      %p177 = scmp.ne.s32.totalorder %s160, %s176
      %p178 = scmp.eq.s32.totalorder %s21, 0
      %p179 = por %p177, %p178
      %p180 = scmp.le.s32.totalorder 1, %s15
      %p181 = scmp.lt.s32.totalorder %s15, 3
      %p182 = pnand %p180, %p181
      %p183 = pneg %p182
      // Predicated region
      $region9: #{tpu_custom_call.1} parent=5 // pred_check
        _
      $region10: #{tpu_custom_call.1} parent=5 // pred_check_branch
        %185 = sbr.rel (%p182) target = $region12
      $region11: #{tpu_custom_call.1} parent=5 // pred_region
        %s186 = ssub.s32 %s15, 1
        // Predicated region
        $region13: #{tpu_custom_call.1} parent=11 // pred_check
          %p187 = pneg %p62
        $region14: #{tpu_custom_call.1} parent=11 // pred_check_branch
          %189 = sbr.rel (%p187) target = $region16
        $region15: #{tpu_custom_call.1} parent=11 // pred_region
          _
        $region16: #{tpu_custom_call.1} parent=11 // pred_fallthru
          _
        // Predicated region
        $region17: #{tpu_custom_call.1} parent=11 // pred_check
          %p190 = pneg %p83
        $region18: #{tpu_custom_call.1} parent=11 // pred_check_branch
          %192 = sbr.rel (%p190) target = $region20
        $region19: #{tpu_custom_call.1} parent=11 // pred_region
          _
        $region20: #{tpu_custom_call.1} parent=11 // pred_fallthru
          _
        // Predicated region
        $region21: #{tpu_custom_call.1} parent=11 // pred_check
          %p193 = pneg %p104
        $region22: #{tpu_custom_call.1} parent=11 // pred_check_branch
          %195 = sbr.rel (%p193) target = $region24
        $region23: #{tpu_custom_call.1} parent=11 // pred_region
          _
        $region24: #{tpu_custom_call.1} parent=11 // pred_fallthru
          _
        // Predicated region
        $region25: #{tpu_custom_call.1} parent=11 // pred_check
          %p196 = pneg %p125
        $region26: #{tpu_custom_call.1} parent=11 // pred_check_branch
          %198 = sbr.rel (%p196) target = $region28
        $region27: #{tpu_custom_call.1} parent=11 // pred_region
          _
        $region28: #{tpu_custom_call.1} parent=11 // pred_fallthru
          _
        // Predicated region
        $region29: #{tpu_custom_call.1} parent=11 // pred_check
          %p199 = pneg %p146
        $region30: #{tpu_custom_call.1} parent=11 // pred_check_branch
          %201 = sbr.rel (%p199) target = $region32
        $region31: #{tpu_custom_call.1} parent=11 // pred_region
          _
        $region32: #{tpu_custom_call.1} parent=11 // pred_fallthru
          _
      $region12: #{tpu_custom_call.1} parent=5 // pred_fallthru
        _
      %p202 = scmp.lt.s32.totalorder %s15, 2
      // Predicated region
      $region33: #{tpu_custom_call.1} parent=5 // pred_check
        %p203 = pneg %p202
      $region34: #{tpu_custom_call.1} parent=5 // pred_check_branch
        %205 = sbr.rel (%p203) target = $region36
      $region35: #{tpu_custom_call.1} parent=5 // pred_region
        // Predicated region
        $region37: #{tpu_custom_call.1} parent=35 // pred_check
          %p206 = pneg %p35
        $region38: #{tpu_custom_call.1} parent=35 // pred_check_branch
          %208 = sbr.rel (%p206) target = $region40
        $region39: #{tpu_custom_call.1} parent=35 // pred_region
          %s209 = smul.u32 16, %s15
          %p210 = scmp.lt.s32.totalorder %s209, 31
          %s211 = scalar_select %p210, %s209, 31
          %s212 = smul.addr %s211, 8
          %s213 = scalar_lea.vmem %s0, %s212
          %s214 = smul.u32 16, %s15
        $region40: #{tpu_custom_call.1} parent=35 // pred_fallthru
          _
      $region36: #{tpu_custom_call.1} parent=5 // pred_fallthru
        _
      %p215 = scmp.le.s32.totalorder 1, %s15
      %p216 = scmp.lt.s32.totalorder %s15, 3
      %p217 = pnand %p215, %p216
      %p218 = pneg %p217
      // Predicated region
      $region41: #{tpu_custom_call.1} parent=5 // pred_check
        _
      $region42: #{tpu_custom_call.1} parent=5 // pred_check_branch
        %220 = sbr.rel (%p217) target = $region44
      $region43: #{tpu_custom_call.1} parent=5 // pred_region
        %s221 = ssub.s32 %s15, 1
        %s222 = smul.u32 16, %s20
        %p223 = scmp.lt.s32.totalorder %s222, 31
        %s224 = scalar_select %p223, %s222, 31
        %s225 = smul.addr %s224, 8
        %s226 = scalar_lea.vmem %s0, %s225
        %p227 = pneg %p41
        %p228 = pneg %p38
        %p229 = pneg %p62
        %p230 = pneg %p59
        %p231 = pneg %p83
        %p232 = pneg %p80
        %p233 = pneg %p104
        %p234 = pneg %p101
        %p235 = pneg %p125
        %p236 = pneg %p122
        %p237 = pneg %p146
        %p238 = pneg %p143
        %p239 = pneg %p172
        %p240 = pneg %p169
        %s241 = sand.u32 %s159, 1
        %s242 = scalar_lea.sflag [#allocation3], %s241
        %s243 = sand.u32 %s159, 1
        %s244 = smul.addr %s243, 32
        %s245 = scalar_lea.vmem [#allocation2], %s244
        %s246 = smul.u32 16, %s20
        %p247 = scmp.lt.s32.totalorder %s246, 31
        %s248 = scalar_select %p247, %s246, 31
        %s249 = smul.addr %s248, 8
        %s250 = scalar_lea.vmem %s0, %s249
        %s251 = smul.u32 16, %s20
        %v252 = vld [vmem:[%s3] sm:$0xf]
        %v253 = vld [vmem:[%s1] sm:$0xf]
        %v254 = vld [vmem:[%s250] sm:$0xff]
        %v255 = vld [vmem:[%s250 + $0x8] sm:$0xff]
        %v256 = vld [vmem:[%s250 + $0x10] sm:$0xff]
        %v257 = vld [vmem:[%s250 + $0x18] sm:$0xff]
        %v258 = vld [vmem:[%s250 + $0x20] sm:$0xff]
        %v259 = vld [vmem:[%s250 + $0x28] sm:$0xff]
        %v260 = vld [vmem:[%s250 + $0x30] sm:$0xff]
        %v261 = vld [vmem:[%s250 + $0x38] sm:$0xff]
        %v262 = vld [vmem:[%s250 + $0x40] sm:$0xff]
        %v263 = vld [vmem:[%s250 + $0x48] sm:$0xff]
        %v264 = vld [vmem:[%s250 + $0x50] sm:$0xff]
        %v265 = vld [vmem:[%s250 + $0x58] sm:$0xff]
        %v266 = vld [vmem:[%s250 + $0x60] sm:$0xff]
        %v267 = vld [vmem:[%s250 + $0x68] sm:$0xff]
        %v268 = vld [vmem:[%s250 + $0x70] sm:$0xff]
        %v269 = vld [vmem:[%s250 + $0x78] sm:$0xff]
        %271 = vset.pattern.permute.xlu0 0
        %272 = vperm.xlu0 %271, %v252
        %v273 = vpop.permute.xlu0 %272
        %vm275 = vcmask 261120
        %v277 = vsel %vm275, %v253, 0
        %v280 = vsel %vm275, %v254, 0
        %v283 = vsel %vm275, %v255, 0
        %v286 = vsel %vm275, %v256, 0
        %v289 = vsel %vm275, %v257, 0
        %v292 = vsel %vm275, %v258, 0
        %v295 = vsel %vm275, %v259, 0
        %v298 = vsel %vm275, %v260, 0
        %v301 = vsel %vm275, %v261, 0
        %v304 = vsel %vm275, %v262, 0
        %v307 = vsel %vm275, %v263, 0
        %v310 = vsel %vm275, %v264, 0
        %v313 = vsel %vm275, %v265, 0
        %v316 = vsel %vm275, %v266, 0
        %v319 = vsel %vm275, %v267, 0
        %v322 = vsel %vm275, %v268, 0
        %v325 = vsel %vm275, %v269, 0
        %327 = vmatprep.subr.mxu0 0.0
        %v328 = vand.u32 %v325, 4294901760
        %329 = vmatpush1.xpose.msra.mxu0 %v328
        %330 = vmatprep.subr.mxu0 0.0
        %v331 = vand.u32 %v322, 4294901760
        %332 = vmatpush1.xpose.msra.mxu0 %v331
        %333 = vmatprep.subr.mxu0 0.0
        %v334 = vand.u32 %v319, 4294901760
        %335 = vmatpush1.xpose.msra.mxu0 %v334
        %336 = vmatprep.subr.mxu0 0.0
        %v337 = vand.u32 %v316, 4294901760
        %338 = vmatpush1.xpose.msra.mxu0 %v337
        %339 = vmatprep.subr.mxu0 0.0
        %v340 = vand.u32 %v313, 4294901760
        %341 = vmatpush1.xpose.msra.mxu0 %v340
        %342 = vmatprep.subr.mxu0 0.0
        %v343 = vand.u32 %v310, 4294901760
        %344 = vmatpush1.xpose.msra.mxu0 %v343
        %345 = vmatprep.subr.mxu0 0.0
        %v346 = vand.u32 %v307, 4294901760
        %347 = vmatpush1.xpose.msra.mxu0 %v346
        %348 = vmatprep.subr.mxu0 0.0
        %v349 = vand.u32 %v304, 4294901760
        %350 = vmatpush1.xpose.msra.mxu0 %v349
        %351 = vmatprep.subr.mxu0 0.0
        %v352 = vand.u32 %v301, 4294901760
        %353 = vmatpush1.xpose.msra.mxu0 %v352
        %354 = vmatprep.subr.mxu0 0.0
        %v355 = vand.u32 %v298, 4294901760
        %356 = vmatpush1.xpose.msra.mxu0 %v355
        %357 = vmatprep.subr.mxu0 0.0
        %v358 = vand.u32 %v295, 4294901760
        %359 = vmatpush1.xpose.msra.mxu0 %v358
        %360 = vmatprep.subr.mxu0 0.0
        %v361 = vand.u32 %v292, 4294901760
        %362 = vmatpush1.xpose.msra.mxu0 %v361
        %363 = vmatprep.subr.mxu0 0.0
        %v364 = vand.u32 %v289, 4294901760
        %365 = vmatpush1.xpose.msra.mxu0 %v364
        %366 = vmatprep.subr.mxu0 0.0
        %v367 = vand.u32 %v286, 4294901760
        %368 = vmatpush1.xpose.msra.mxu0 %v367
        %369 = vmatprep.subr.mxu0 0.0
        %v370 = vand.u32 %v283, 4294901760
        %371 = vmatpush1.xpose.msra.mxu0 %v370
        %372 = vmatprep.subr.mxu0 0.0
        %v373 = vand.u32 %v280, 4294901760
        %374 = vmatpush1.xpose.msra.mxu0 %v373
        %375 = vmatprep.subr.mxu0 0.0
        %376 = vmatpush2.xpose.msra.mxu0 0.0
        %377 = vmatprep.subr.mxu0 0.0
        %378 = vmatpush2.xpose.msra.mxu0 0.0
        %379 = vmatprep.subr.mxu0 0.0
        %380 = vmatpush2.xpose.msra.mxu0 0.0
        %381 = vmatprep.subr.mxu0 0.0
        %382 = vmatpush2.xpose.msra.mxu0 0.0
        %383 = vmatprep.subr.mxu0 0.0
        %384 = vmatpush2.xpose.msra.mxu0 0.0
        %385 = vmatprep.subr.mxu0 0.0
        %386 = vmatpush2.xpose.msra.mxu0 0.0
        %387 = vmatprep.subr.mxu0 0.0
        %388 = vmatpush2.xpose.msra.mxu0 0.0
        %389 = vmatprep.subr.mxu0 0.0
        %390 = vmatpush2.xpose.msra.mxu0 0.0
        %391 = vmatprep.subr.mxu0 0.0
        %392 = vmatpush2.xpose.msra.mxu0 0.0
        %393 = vmatprep.subr.mxu0 0.0
        %394 = vmatpush2.xpose.msra.mxu0 0.0
        %395 = vmatprep.subr.mxu0 0.0
        %396 = vmatpush2.xpose.msra.mxu0 0.0
        %397 = vmatprep.subr.mxu0 0.0
        %398 = vmatpush2.xpose.msra.mxu0 0.0
        %399 = vmatprep.subr.mxu0 0.0
        %400 = vmatpush2.xpose.msra.mxu0 0.0
        %401 = vmatprep.subr.mxu0 0.0
        %402 = vmatpush2.xpose.msra.mxu0 0.0
        %403 = vmatprep.subr.mxu0 0.0
        %404 = vmatpush2.xpose.msra.mxu0 0.0
        %405 = vmatprep.subr.mxu0 0.0
        %406 = vmatpush2.xpose.msra.mxu0 0.0
        %407 = vmatprep.mubr.f32.mxu0 0.0
        %v408 = vand.u32 %v277, 4294901760
        %v409 = vsub.f32 %v277, %v408
        %v410 = vand.u32 %v409, 4294901760
        %v411 = vsub.f32 %v409, %v410
        %v412 = vand.u32 %v411, 4294901760
        %413 = vmatmul.mubr.f32.gmra.mxu0 %v412
        %v414 = vpop.f32.mrf.mxu0
        %v415 = vadd.f32 %v273, %v414
        %v416 = vpop.f32.mrf.mxu0
        %417 = vdwg.mxu0
        %418 = vmatprep.subr.mxu0 0.0
        %v419 = vand.u32 %v325, 4294901760
        %v420 = vsub.f32 %v325, %v419
        %v421 = vand.u32 %v420, 4294901760
        %v422 = vsub.f32 %v420, %v421
        %v423 = vand.u32 %v422, 4294901760
        %424 = vmatpush1.xpose.msra.mxu0 %v423
        %425 = vmatprep.subr.mxu0 0.0
        %v426 = vand.u32 %v322, 4294901760
        %v427 = vsub.f32 %v322, %v426
        %v428 = vand.u32 %v427, 4294901760
        %v429 = vsub.f32 %v427, %v428
        %v430 = vand.u32 %v429, 4294901760
        %431 = vmatpush1.xpose.msra.mxu0 %v430
        %432 = vmatprep.subr.mxu0 0.0
        %v433 = vand.u32 %v319, 4294901760
        %v434 = vsub.f32 %v319, %v433
        %v435 = vand.u32 %v434, 4294901760
        %v436 = vsub.f32 %v434, %v435
        %v437 = vand.u32 %v436, 4294901760
        %438 = vmatpush1.xpose.msra.mxu0 %v437
        %439 = vmatprep.subr.mxu0 0.0
        %v440 = vand.u32 %v316, 4294901760
        %v441 = vsub.f32 %v316, %v440
        %v442 = vand.u32 %v441, 4294901760
        %v443 = vsub.f32 %v441, %v442
        %v444 = vand.u32 %v443, 4294901760
        %445 = vmatpush1.xpose.msra.mxu0 %v444
        %446 = vmatprep.subr.mxu0 0.0
        %v447 = vand.u32 %v313, 4294901760
        %v448 = vsub.f32 %v313, %v447
        %v449 = vand.u32 %v448, 4294901760
        %v450 = vsub.f32 %v448, %v449
        %v451 = vand.u32 %v450, 4294901760
        %452 = vmatpush1.xpose.msra.mxu0 %v451
        %453 = vmatprep.subr.mxu0 0.0
        %v454 = vand.u32 %v310, 4294901760
        %v455 = vsub.f32 %v310, %v454
        %v456 = vand.u32 %v455, 4294901760
        %v457 = vsub.f32 %v455, %v456
        %v458 = vand.u32 %v457, 4294901760
        %459 = vmatpush1.xpose.msra.mxu0 %v458
        %460 = vmatprep.subr.mxu0 0.0
        %v461 = vand.u32 %v307, 4294901760
        %v462 = vsub.f32 %v307, %v461
        %v463 = vand.u32 %v462, 4294901760
        %v464 = vsub.f32 %v462, %v463
        %v465 = vand.u32 %v464, 4294901760
        %466 = vmatpush1.xpose.msra.mxu0 %v465
        %467 = vmatprep.subr.mxu0 0.0
        %v468 = vand.u32 %v304, 4294901760
        %v469 = vsub.f32 %v304, %v468
        %v470 = vand.u32 %v469, 4294901760
        %v471 = vsub.f32 %v469, %v470
        %v472 = vand.u32 %v471, 4294901760
        %473 = vmatpush1.xpose.msra.mxu0 %v472
        %474 = vmatprep.subr.mxu0 0.0
        %v475 = vand.u32 %v301, 4294901760
        %v476 = vsub.f32 %v301, %v475
        %v477 = vand.u32 %v476, 4294901760
        %v478 = vsub.f32 %v476, %v477
        %v479 = vand.u32 %v478, 4294901760
        %480 = vmatpush1.xpose.msra.mxu0 %v479
        %481 = vmatprep.subr.mxu0 0.0
        %v482 = vand.u32 %v298, 4294901760
        %v483 = vsub.f32 %v298, %v482
        %v484 = vand.u32 %v483, 4294901760
        %v485 = vsub.f32 %v483, %v484
        %v486 = vand.u32 %v485, 4294901760
        %487 = vmatpush1.xpose.msra.mxu0 %v486
        %488 = vmatprep.subr.mxu0 0.0
        %v489 = vand.u32 %v295, 4294901760
        %v490 = vsub.f32 %v295, %v489
        %v491 = vand.u32 %v490, 4294901760
        %v492 = vsub.f32 %v490, %v491
        %v493 = vand.u32 %v492, 4294901760
        %494 = vmatpush1.xpose.msra.mxu0 %v493
        %495 = vmatprep.subr.mxu0 0.0
        %v496 = vand.u32 %v292, 4294901760
        %v497 = vsub.f32 %v292, %v496
        %v498 = vand.u32 %v497, 4294901760
        %v499 = vsub.f32 %v497, %v498
        %v500 = vand.u32 %v499, 4294901760
        %501 = vmatpush1.xpose.msra.mxu0 %v500
        %502 = vmatprep.subr.mxu0 0.0
        %v503 = vand.u32 %v289, 4294901760
        %v504 = vsub.f32 %v289, %v503
        %v505 = vand.u32 %v504, 4294901760
        %v506 = vsub.f32 %v504, %v505
        %v507 = vand.u32 %v506, 4294901760
        %508 = vmatpush1.xpose.msra.mxu0 %v507
        %509 = vmatprep.subr.mxu0 0.0
        %v510 = vand.u32 %v286, 4294901760
        %v511 = vsub.f32 %v286, %v510
        %v512 = vand.u32 %v511, 4294901760
        %v513 = vsub.f32 %v511, %v512
        %v514 = vand.u32 %v513, 4294901760
        %515 = vmatpush1.xpose.msra.mxu0 %v514
        %516 = vmatprep.subr.mxu0 0.0
        %v517 = vand.u32 %v283, 4294901760
        %v518 = vsub.f32 %v283, %v517
        %v519 = vand.u32 %v518, 4294901760
        %v520 = vsub.f32 %v518, %v519
        %v521 = vand.u32 %v520, 4294901760
        %522 = vmatpush1.xpose.msra.mxu0 %v521
        %523 = vmatprep.subr.mxu0 0.0
        %v524 = vand.u32 %v280, 4294901760
        %v525 = vsub.f32 %v280, %v524
        %v526 = vand.u32 %v525, 4294901760
        %v527 = vsub.f32 %v525, %v526
        %v528 = vand.u32 %v527, 4294901760
        %529 = vmatpush1.xpose.msra.mxu0 %v528
        %530 = vmatprep.subr.mxu0 0.0
        %531 = vmatpush2.xpose.msra.mxu0 0.0
        %532 = vmatprep.subr.mxu0 0.0
        %533 = vmatpush2.xpose.msra.mxu0 0.0
        %534 = vmatprep.subr.mxu0 0.0
        %535 = vmatpush2.xpose.msra.mxu0 0.0
        %536 = vmatprep.subr.mxu0 0.0
        %537 = vmatpush2.xpose.msra.mxu0 0.0
        %538 = vmatprep.subr.mxu0 0.0
        %539 = vmatpush2.xpose.msra.mxu0 0.0
        %540 = vmatprep.subr.mxu0 0.0
        %541 = vmatpush2.xpose.msra.mxu0 0.0
        %542 = vmatprep.subr.mxu0 0.0
        %543 = vmatpush2.xpose.msra.mxu0 0.0
        %544 = vmatprep.subr.mxu0 0.0
        %545 = vmatpush2.xpose.msra.mxu0 0.0
        %546 = vmatprep.subr.mxu0 0.0
        %547 = vmatpush2.xpose.msra.mxu0 0.0
        %548 = vmatprep.subr.mxu0 0.0
        %549 = vmatpush2.xpose.msra.mxu0 0.0
        %550 = vmatprep.subr.mxu0 0.0
        %551 = vmatpush2.xpose.msra.mxu0 0.0
        %552 = vmatprep.subr.mxu0 0.0
        %553 = vmatpush2.xpose.msra.mxu0 0.0
        %554 = vmatprep.subr.mxu0 0.0
        %555 = vmatpush2.xpose.msra.mxu0 0.0
        %556 = vmatprep.subr.mxu0 0.0
        %557 = vmatpush2.xpose.msra.mxu0 0.0
        %558 = vmatprep.subr.mxu0 0.0
        %559 = vmatpush2.xpose.msra.mxu0 0.0
        %560 = vmatprep.subr.mxu0 0.0
        %561 = vmatpush2.xpose.msra.mxu0 0.0
        %562 = vmatprep.mubr.f32.mxu0 0.0
        %v563 = vand.u32 %v277, 4294901760
        %564 = vmatmul.mubr.f32.gmra.mxu0 %v563
        %v565 = vpop.f32.mrf.mxu0
        %v566 = vadd.f32 %v415, %v565
        %v567 = vpop.f32.mrf.mxu0
        %568 = vdwg.mxu0
        %569 = vmatprep.subr.mxu0 0.0
        %v570 = vand.u32 %v325, 4294901760
        %v571 = vsub.f32 %v325, %v570
        %572 = vmatpush1.xpose.msra.mxu0 %v571
        %573 = vmatprep.subr.mxu0 0.0
        %v574 = vand.u32 %v322, 4294901760
        %v575 = vsub.f32 %v322, %v574
        %576 = vmatpush1.xpose.msra.mxu0 %v575
        %577 = vmatprep.subr.mxu0 0.0
        %v578 = vand.u32 %v319, 4294901760
        %v579 = vsub.f32 %v319, %v578
        %580 = vmatpush1.xpose.msra.mxu0 %v579
        %581 = vmatprep.subr.mxu0 0.0
        %v582 = vand.u32 %v316, 4294901760
        %v583 = vsub.f32 %v316, %v582
        %584 = vmatpush1.xpose.msra.mxu0 %v583
        %585 = vmatprep.subr.mxu0 0.0
        %v586 = vand.u32 %v313, 4294901760
        %v587 = vsub.f32 %v313, %v586
        %588 = vmatpush1.xpose.msra.mxu0 %v587
        %589 = vmatprep.subr.mxu0 0.0
        %v590 = vand.u32 %v310, 4294901760
        %v591 = vsub.f32 %v310, %v590
        %592 = vmatpush1.xpose.msra.mxu0 %v591
        %593 = vmatprep.subr.mxu0 0.0
        %v594 = vand.u32 %v307, 4294901760
        %v595 = vsub.f32 %v307, %v594
        %596 = vmatpush1.xpose.msra.mxu0 %v595
        %597 = vmatprep.subr.mxu0 0.0
        %v598 = vand.u32 %v304, 4294901760
        %v599 = vsub.f32 %v304, %v598
        %600 = vmatpush1.xpose.msra.mxu0 %v599
        %601 = vmatprep.subr.mxu0 0.0
        %v602 = vand.u32 %v301, 4294901760
        %v603 = vsub.f32 %v301, %v602
        %604 = vmatpush1.xpose.msra.mxu0 %v603
        %605 = vmatprep.subr.mxu0 0.0
        %v606 = vand.u32 %v298, 4294901760
        %v607 = vsub.f32 %v298, %v606
        %608 = vmatpush1.xpose.msra.mxu0 %v607
        %609 = vmatprep.subr.mxu0 0.0
        %v610 = vand.u32 %v295, 4294901760
        %v611 = vsub.f32 %v295, %v610
        %612 = vmatpush1.xpose.msra.mxu0 %v611
        %613 = vmatprep.subr.mxu0 0.0
        %v614 = vand.u32 %v292, 4294901760
        %v615 = vsub.f32 %v292, %v614
        %616 = vmatpush1.xpose.msra.mxu0 %v615
        %617 = vmatprep.subr.mxu0 0.0
        %v618 = vand.u32 %v289, 4294901760
        %v619 = vsub.f32 %v289, %v618
        %620 = vmatpush1.xpose.msra.mxu0 %v619
        %621 = vmatprep.subr.mxu0 0.0
        %v622 = vand.u32 %v286, 4294901760
        %v623 = vsub.f32 %v286, %v622
        %624 = vmatpush1.xpose.msra.mxu0 %v623
        %625 = vmatprep.subr.mxu0 0.0
        %v626 = vand.u32 %v283, 4294901760
        %v627 = vsub.f32 %v283, %v626
        %628 = vmatpush1.xpose.msra.mxu0 %v627
        %629 = vmatprep.subr.mxu0 0.0
        %v630 = vand.u32 %v280, 4294901760
        %v631 = vsub.f32 %v280, %v630
        %632 = vmatpush1.xpose.msra.mxu0 %v631
        %633 = vmatprep.subr.mxu0 0.0
        %634 = vmatpush2.xpose.msra.mxu0 0.0
        %635 = vmatprep.subr.mxu0 0.0
        %636 = vmatpush2.xpose.msra.mxu0 0.0
        %637 = vmatprep.subr.mxu0 0.0
        %638 = vmatpush2.xpose.msra.mxu0 0.0
        %639 = vmatprep.subr.mxu0 0.0
        %640 = vmatpush2.xpose.msra.mxu0 0.0
        %641 = vmatprep.subr.mxu0 0.0
        %642 = vmatpush2.xpose.msra.mxu0 0.0
        %643 = vmatprep.subr.mxu0 0.0
        %644 = vmatpush2.xpose.msra.mxu0 0.0
        %645 = vmatprep.subr.mxu0 0.0
        %646 = vmatpush2.xpose.msra.mxu0 0.0
        %647 = vmatprep.subr.mxu0 0.0
        %648 = vmatpush2.xpose.msra.mxu0 0.0
        %649 = vmatprep.subr.mxu0 0.0
        %650 = vmatpush2.xpose.msra.mxu0 0.0
        %651 = vmatprep.subr.mxu0 0.0
        %652 = vmatpush2.xpose.msra.mxu0 0.0
        %653 = vmatprep.subr.mxu0 0.0
        %654 = vmatpush2.xpose.msra.mxu0 0.0
        %655 = vmatprep.subr.mxu0 0.0
        %656 = vmatpush2.xpose.msra.mxu0 0.0
        %657 = vmatprep.subr.mxu0 0.0
        %658 = vmatpush2.xpose.msra.mxu0 0.0
        %659 = vmatprep.subr.mxu0 0.0
        %660 = vmatpush2.xpose.msra.mxu0 0.0
        %661 = vmatprep.subr.mxu0 0.0
        %662 = vmatpush2.xpose.msra.mxu0 0.0
        %663 = vmatprep.subr.mxu0 0.0
        %664 = vmatpush2.xpose.msra.mxu0 0.0
        %665 = vmatprep.mubr.f32.mxu0 0.0
        %v666 = vand.u32 %v277, 4294901760
        %v667 = vsub.f32 %v277, %v666
        %668 = vmatmul.mubr.f32.gmra.mxu0 %v667
        %v669 = vpop.f32.mrf.mxu0
        %v670 = vadd.f32 %v566, %v669
        %v671 = vpop.f32.mrf.mxu0
        %672 = vdwg.mxu0
        %673 = vmatprep.subr.mxu0 0.0
        %v674 = vand.u32 %v325, 4294901760
        %675 = vmatpush1.xpose.msra.mxu0 %v674
        %676 = vmatprep.subr.mxu0 0.0
        %v677 = vand.u32 %v322, 4294901760
        %678 = vmatpush1.xpose.msra.mxu0 %v677
        %679 = vmatprep.subr.mxu0 0.0
        %v680 = vand.u32 %v319, 4294901760
        %681 = vmatpush1.xpose.msra.mxu0 %v680
        %682 = vmatprep.subr.mxu0 0.0
        %v683 = vand.u32 %v316, 4294901760
        %684 = vmatpush1.xpose.msra.mxu0 %v683
        %685 = vmatprep.subr.mxu0 0.0
        %v686 = vand.u32 %v313, 4294901760
        %687 = vmatpush1.xpose.msra.mxu0 %v686
        %688 = vmatprep.subr.mxu0 0.0
        %v689 = vand.u32 %v310, 4294901760
        %690 = vmatpush1.xpose.msra.mxu0 %v689
        %691 = vmatprep.subr.mxu0 0.0
        %v692 = vand.u32 %v307, 4294901760
        %693 = vmatpush1.xpose.msra.mxu0 %v692
        %694 = vmatprep.subr.mxu0 0.0
        %v695 = vand.u32 %v304, 4294901760
        %696 = vmatpush1.xpose.msra.mxu0 %v695
        %697 = vmatprep.subr.mxu0 0.0
        %v698 = vand.u32 %v301, 4294901760
        %699 = vmatpush1.xpose.msra.mxu0 %v698
        %700 = vmatprep.subr.mxu0 0.0
        %v701 = vand.u32 %v298, 4294901760
        %702 = vmatpush1.xpose.msra.mxu0 %v701
        %703 = vmatprep.subr.mxu0 0.0
        %v704 = vand.u32 %v295, 4294901760
        %705 = vmatpush1.xpose.msra.mxu0 %v704
        %706 = vmatprep.subr.mxu0 0.0
        %v707 = vand.u32 %v292, 4294901760
        %708 = vmatpush1.xpose.msra.mxu0 %v707
        %709 = vmatprep.subr.mxu0 0.0
        %v710 = vand.u32 %v289, 4294901760
        %711 = vmatpush1.xpose.msra.mxu0 %v710
        %712 = vmatprep.subr.mxu0 0.0
        %v713 = vand.u32 %v286, 4294901760
        %714 = vmatpush1.xpose.msra.mxu0 %v713
        %715 = vmatprep.subr.mxu0 0.0
        %v716 = vand.u32 %v283, 4294901760
        %717 = vmatpush1.xpose.msra.mxu0 %v716
        %718 = vmatprep.subr.mxu0 0.0
        %v719 = vand.u32 %v280, 4294901760
        %720 = vmatpush1.xpose.msra.mxu0 %v719
        %721 = vmatprep.subr.mxu0 0.0
        %722 = vmatpush2.xpose.msra.mxu0 0.0
        %723 = vmatprep.subr.mxu0 0.0
        %724 = vmatpush2.xpose.msra.mxu0 0.0
        %725 = vmatprep.subr.mxu0 0.0
        %726 = vmatpush2.xpose.msra.mxu0 0.0
        %727 = vmatprep.subr.mxu0 0.0
        %728 = vmatpush2.xpose.msra.mxu0 0.0
        %729 = vmatprep.subr.mxu0 0.0
        %730 = vmatpush2.xpose.msra.mxu0 0.0
        %731 = vmatprep.subr.mxu0 0.0
        %732 = vmatpush2.xpose.msra.mxu0 0.0
        %733 = vmatprep.subr.mxu0 0.0
        %734 = vmatpush2.xpose.msra.mxu0 0.0
        %735 = vmatprep.subr.mxu0 0.0
        %736 = vmatpush2.xpose.msra.mxu0 0.0
        %737 = vmatprep.subr.mxu0 0.0
        %738 = vmatpush2.xpose.msra.mxu0 0.0
        %739 = vmatprep.subr.mxu0 0.0
        %740 = vmatpush2.xpose.msra.mxu0 0.0
        %741 = vmatprep.subr.mxu0 0.0
        %742 = vmatpush2.xpose.msra.mxu0 0.0
        %743 = vmatprep.subr.mxu0 0.0
        %744 = vmatpush2.xpose.msra.mxu0 0.0
        %745 = vmatprep.subr.mxu0 0.0
        %746 = vmatpush2.xpose.msra.mxu0 0.0
        %747 = vmatprep.subr.mxu0 0.0
        %748 = vmatpush2.xpose.msra.mxu0 0.0
        %749 = vmatprep.subr.mxu0 0.0
        %750 = vmatpush2.xpose.msra.mxu0 0.0
        %751 = vmatprep.subr.mxu0 0.0
        %752 = vmatpush2.xpose.msra.mxu0 0.0
        %753 = vmatprep.mubr.f32.mxu0 0.0
        %v754 = vand.u32 %v277, 4294901760
        %v755 = vsub.f32 %v277, %v754
        %v756 = vand.u32 %v755, 4294901760
        %757 = vmatmul.mubr.f32.gmra.mxu0 %v756
        %v758 = vpop.f32.mrf.mxu0
        %v759 = vadd.f32 %v670, %v758
        %v760 = vpop.f32.mrf.mxu0
        %761 = vdwg.mxu0
        %762 = vmatprep.subr.mxu0 0.0
        %v763 = vand.u32 %v325, 4294901760
        %v764 = vsub.f32 %v325, %v763
        %v765 = vand.u32 %v764, 4294901760
        %766 = vmatpush1.xpose.msra.mxu0 %v765
        %767 = vmatprep.subr.mxu0 0.0
        %v768 = vand.u32 %v322, 4294901760
        %v769 = vsub.f32 %v322, %v768
        %v770 = vand.u32 %v769, 4294901760
        %771 = vmatpush1.xpose.msra.mxu0 %v770
        %772 = vmatprep.subr.mxu0 0.0
        %v773 = vand.u32 %v319, 4294901760
        %v774 = vsub.f32 %v319, %v773
        %v775 = vand.u32 %v774, 4294901760
        %776 = vmatpush1.xpose.msra.mxu0 %v775
        %777 = vmatprep.subr.mxu0 0.0
        %v778 = vand.u32 %v316, 4294901760
        %v779 = vsub.f32 %v316, %v778
        %v780 = vand.u32 %v779, 4294901760
        %781 = vmatpush1.xpose.msra.mxu0 %v780
        %782 = vmatprep.subr.mxu0 0.0
        %v783 = vand.u32 %v313, 4294901760
        %v784 = vsub.f32 %v313, %v783
        %v785 = vand.u32 %v784, 4294901760
        %786 = vmatpush1.xpose.msra.mxu0 %v785
        %787 = vmatprep.subr.mxu0 0.0
        %v788 = vand.u32 %v310, 4294901760
        %v789 = vsub.f32 %v310, %v788
        %v790 = vand.u32 %v789, 4294901760
        %791 = vmatpush1.xpose.msra.mxu0 %v790
        %792 = vmatprep.subr.mxu0 0.0
        %v793 = vand.u32 %v307, 4294901760
        %v794 = vsub.f32 %v307, %v793
        %v795 = vand.u32 %v794, 4294901760
        %796 = vmatpush1.xpose.msra.mxu0 %v795
        %797 = vmatprep.subr.mxu0 0.0
        %v798 = vand.u32 %v304, 4294901760
        %v799 = vsub.f32 %v304, %v798
        %v800 = vand.u32 %v799, 4294901760
        %801 = vmatpush1.xpose.msra.mxu0 %v800
        %802 = vmatprep.subr.mxu0 0.0
        %v803 = vand.u32 %v301, 4294901760
        %v804 = vsub.f32 %v301, %v803
        %v805 = vand.u32 %v804, 4294901760
        %806 = vmatpush1.xpose.msra.mxu0 %v805
        %807 = vmatprep.subr.mxu0 0.0
        %v808 = vand.u32 %v298, 4294901760
        %v809 = vsub.f32 %v298, %v808
        %v810 = vand.u32 %v809, 4294901760
        %811 = vmatpush1.xpose.msra.mxu0 %v810
        %812 = vmatprep.subr.mxu0 0.0
        %v813 = vand.u32 %v295, 4294901760
        %v814 = vsub.f32 %v295, %v813
        %v815 = vand.u32 %v814, 4294901760
        %816 = vmatpush1.xpose.msra.mxu0 %v815
        %817 = vmatprep.subr.mxu0 0.0
        %v818 = vand.u32 %v292, 4294901760
        %v819 = vsub.f32 %v292, %v818
        %v820 = vand.u32 %v819, 4294901760
        %821 = vmatpush1.xpose.msra.mxu0 %v820
        %822 = vmatprep.subr.mxu0 0.0
        %v823 = vand.u32 %v289, 4294901760
        %v824 = vsub.f32 %v289, %v823
        %v825 = vand.u32 %v824, 4294901760
        %826 = vmatpush1.xpose.msra.mxu0 %v825
        %827 = vmatprep.subr.mxu0 0.0
        %v828 = vand.u32 %v286, 4294901760
        %v829 = vsub.f32 %v286, %v828
        %v830 = vand.u32 %v829, 4294901760
        %831 = vmatpush1.xpose.msra.mxu0 %v830
        %832 = vmatprep.subr.mxu0 0.0
        %v833 = vand.u32 %v283, 4294901760
        %v834 = vsub.f32 %v283, %v833
        %v835 = vand.u32 %v834, 4294901760
        %836 = vmatpush1.xpose.msra.mxu0 %v835
        %837 = vmatprep.subr.mxu0 0.0
        %v838 = vand.u32 %v280, 4294901760
        %v839 = vsub.f32 %v280, %v838
        %v840 = vand.u32 %v839, 4294901760
        %841 = vmatpush1.xpose.msra.mxu0 %v840
        %842 = vmatprep.subr.mxu0 0.0
        %843 = vmatpush2.xpose.msra.mxu0 0.0
        %844 = vmatprep.subr.mxu0 0.0
        %845 = vmatpush2.xpose.msra.mxu0 0.0
        %846 = vmatprep.subr.mxu0 0.0
        %847 = vmatpush2.xpose.msra.mxu0 0.0
        %848 = vmatprep.subr.mxu0 0.0
        %849 = vmatpush2.xpose.msra.mxu0 0.0
        %850 = vmatprep.subr.mxu0 0.0
        %851 = vmatpush2.xpose.msra.mxu0 0.0
        %852 = vmatprep.subr.mxu0 0.0
        %853 = vmatpush2.xpose.msra.mxu0 0.0
        %854 = vmatprep.subr.mxu0 0.0
        %855 = vmatpush2.xpose.msra.mxu0 0.0
        %856 = vmatprep.subr.mxu0 0.0
        %857 = vmatpush2.xpose.msra.mxu0 0.0
        %858 = vmatprep.subr.mxu0 0.0
        %859 = vmatpush2.xpose.msra.mxu0 0.0
        %860 = vmatprep.subr.mxu0 0.0
        %861 = vmatpush2.xpose.msra.mxu0 0.0
        %862 = vmatprep.subr.mxu0 0.0
        %863 = vmatpush2.xpose.msra.mxu0 0.0
        %864 = vmatprep.subr.mxu0 0.0
        %865 = vmatpush2.xpose.msra.mxu0 0.0
        %866 = vmatprep.subr.mxu0 0.0
        %867 = vmatpush2.xpose.msra.mxu0 0.0
        %868 = vmatprep.subr.mxu0 0.0
        %869 = vmatpush2.xpose.msra.mxu0 0.0
        %870 = vmatprep.subr.mxu0 0.0
        %871 = vmatpush2.xpose.msra.mxu0 0.0
        %872 = vmatprep.subr.mxu0 0.0
        %873 = vmatpush2.xpose.msra.mxu0 0.0
        %874 = vmatprep.mubr.f32.mxu0 0.0
        %v875 = vand.u32 %v277, 4294901760
        %876 = vmatmul.mubr.f32.gmra.mxu0 %v875
        %v877 = vpop.f32.mrf.mxu0
        %v878 = vadd.f32 %v759, %v877
        %v879 = vpop.f32.mrf.mxu0
        %880 = vdwg.mxu0
        %881 = vmatprep.subr.mxu0 0.0
        %v882 = vand.u32 %v325, 4294901760
        %883 = vmatpush1.xpose.msra.mxu0 %v882
        %884 = vmatprep.subr.mxu0 0.0
        %v885 = vand.u32 %v322, 4294901760
        %886 = vmatpush1.xpose.msra.mxu0 %v885
        %887 = vmatprep.subr.mxu0 0.0
        %v888 = vand.u32 %v319, 4294901760
        %889 = vmatpush1.xpose.msra.mxu0 %v888
        %890 = vmatprep.subr.mxu0 0.0
        %v891 = vand.u32 %v316, 4294901760
        %892 = vmatpush1.xpose.msra.mxu0 %v891
        %893 = vmatprep.subr.mxu0 0.0
        %v894 = vand.u32 %v313, 4294901760
        %895 = vmatpush1.xpose.msra.mxu0 %v894
        %896 = vmatprep.subr.mxu0 0.0
        %v897 = vand.u32 %v310, 4294901760
        %898 = vmatpush1.xpose.msra.mxu0 %v897
        %899 = vmatprep.subr.mxu0 0.0
        %v900 = vand.u32 %v307, 4294901760
        %901 = vmatpush1.xpose.msra.mxu0 %v900
        %902 = vmatprep.subr.mxu0 0.0
        %v903 = vand.u32 %v304, 4294901760
        %904 = vmatpush1.xpose.msra.mxu0 %v903
        %905 = vmatprep.subr.mxu0 0.0
        %v906 = vand.u32 %v301, 4294901760
        %907 = vmatpush1.xpose.msra.mxu0 %v906
        %908 = vmatprep.subr.mxu0 0.0
        %v909 = vand.u32 %v298, 4294901760
        %910 = vmatpush1.xpose.msra.mxu0 %v909
        %911 = vmatprep.subr.mxu0 0.0
        %v912 = vand.u32 %v295, 4294901760
        %913 = vmatpush1.xpose.msra.mxu0 %v912
        %914 = vmatprep.subr.mxu0 0.0
        %v915 = vand.u32 %v292, 4294901760
        %916 = vmatpush1.xpose.msra.mxu0 %v915
        %917 = vmatprep.subr.mxu0 0.0
        %v918 = vand.u32 %v289, 4294901760
        %919 = vmatpush1.xpose.msra.mxu0 %v918
        %920 = vmatprep.subr.mxu0 0.0
        %v921 = vand.u32 %v286, 4294901760
        %922 = vmatpush1.xpose.msra.mxu0 %v921
        %923 = vmatprep.subr.mxu0 0.0
        %v924 = vand.u32 %v283, 4294901760
        %925 = vmatpush1.xpose.msra.mxu0 %v924
        %926 = vmatprep.subr.mxu0 0.0
        %v927 = vand.u32 %v280, 4294901760
        %928 = vmatpush1.xpose.msra.mxu0 %v927
        %929 = vmatprep.subr.mxu0 0.0
        %930 = vmatpush2.xpose.msra.mxu0 0.0
        %931 = vmatprep.subr.mxu0 0.0
        %932 = vmatpush2.xpose.msra.mxu0 0.0
        %933 = vmatprep.subr.mxu0 0.0
        %934 = vmatpush2.xpose.msra.mxu0 0.0
        %935 = vmatprep.subr.mxu0 0.0
        %936 = vmatpush2.xpose.msra.mxu0 0.0
        %937 = vmatprep.subr.mxu0 0.0
        %938 = vmatpush2.xpose.msra.mxu0 0.0
        %939 = vmatprep.subr.mxu0 0.0
        %940 = vmatpush2.xpose.msra.mxu0 0.0
        %941 = vmatprep.subr.mxu0 0.0
        %942 = vmatpush2.xpose.msra.mxu0 0.0
        %943 = vmatprep.subr.mxu0 0.0
        %944 = vmatpush2.xpose.msra.mxu0 0.0
        %945 = vmatprep.subr.mxu0 0.0
        %946 = vmatpush2.xpose.msra.mxu0 0.0
        %947 = vmatprep.subr.mxu0 0.0
        %948 = vmatpush2.xpose.msra.mxu0 0.0
        %949 = vmatprep.subr.mxu0 0.0
        %950 = vmatpush2.xpose.msra.mxu0 0.0
        %951 = vmatprep.subr.mxu0 0.0
        %952 = vmatpush2.xpose.msra.mxu0 0.0
        %953 = vmatprep.subr.mxu0 0.0
        %954 = vmatpush2.xpose.msra.mxu0 0.0
        %955 = vmatprep.subr.mxu0 0.0
        %956 = vmatpush2.xpose.msra.mxu0 0.0
        %957 = vmatprep.subr.mxu0 0.0
        %958 = vmatpush2.xpose.msra.mxu0 0.0
        %959 = vmatprep.subr.mxu0 0.0
        %960 = vmatpush2.xpose.msra.mxu0 0.0
        %961 = vmatprep.mubr.f32.mxu0 0.0
        %v962 = vand.u32 %v277, 4294901760
        %963 = vmatmul.mubr.f32.gmra.mxu0 %v962
        %v964 = vpop.f32.mrf.mxu0
        %v965 = vadd.f32 %v878, %v964
        %v966 = vpop.f32.mrf.mxu0
        %967 = vdwg.mxu0
        %v968 = vmax.f32 %v965, 0.0
        %v969 = vld [vmem:[%s2] sm:$0xf]
        %v970 = vld [vmem:[%s2 + $0x4] sm:$0xf]
        %v971 = vld [vmem:[%s2 + $0x8] sm:$0xf]
        %v972 = vld [vmem:[%s2 + $0xc] sm:$0xf]
        %974 = vset.pattern.permute.xlu0 0
        %975 = vperm.xlu0 %974, %v969
        %v976 = vpop.permute.xlu0 %975
        %979 = vset.pattern.permute.xlu0 0
        %980 = vperm.xlu0 %979, %v970
        %v981 = vpop.permute.xlu0 %980
        %984 = vset.pattern.permute.xlu0 0
        %985 = vperm.xlu0 %984, %v971
        %v986 = vpop.permute.xlu0 %985
        %989 = vset.pattern.permute.xlu0 0
        %990 = vperm.xlu0 %989, %v972
        %v991 = vpop.permute.xlu0 %990
        %v993 = vmul.f32 %v976, %v968
        %v994 = vmul.f32 %v981, %v968
        %v995 = vmul.f32 %v986, %v968
        %v996 = vmul.f32 %v991, %v968
        %vm997 = vcmask 1043456
        %v998 = vsel %vm997, %v993, 0.0
        %v999 = vrot.slane %v998, 4
        %v1000 = vadd.f32 %v998, %v999
        %v1001 = vrot.slane %v1000, 2
        %v1002 = vadd.f32 %v1000, %v1001
        %v1003 = vrot.slane %v1002, 1
        %v1004 = vadd.f32 %v1002, %v1003
        %v1005 = vsel %vm997, %v994, 0.0
        %v1006 = vrot.slane %v1005, 4
        %v1007 = vadd.f32 %v1005, %v1006
        %v1008 = vrot.slane %v1007, 2
        %v1009 = vadd.f32 %v1007, %v1008
        %v1010 = vrot.slane %v1009, 1
        %v1011 = vadd.f32 %v1009, %v1010
        %v1012 = vsel %vm997, %v995, 0.0
        %v1013 = vrot.slane %v1012, 4
        %v1014 = vadd.f32 %v1012, %v1013
        %v1015 = vrot.slane %v1014, 2
        %v1016 = vadd.f32 %v1014, %v1015
        %v1017 = vrot.slane %v1016, 1
        %v1018 = vadd.f32 %v1016, %v1017
        %v1019 = vsel %vm997, %v996, 0.0
        %v1020 = vrot.slane %v1019, 4
        %v1021 = vadd.f32 %v1019, %v1020
        %v1022 = vrot.slane %v1021, 2
        %v1023 = vadd.f32 %v1021, %v1022
        %v1024 = vrot.slane %v1023, 1
        %v1025 = vadd.f32 %v1023, %v1024
        %1026 = vset.pattern.permute.xlu0 1
        %1027 = vperm.xlu0 %1026, %v252
        %v1028 = vpop.permute.xlu0 %1027
        %v1029 = vrot.slane %v1028, 1
        %v1030 = vrot.slane %v1028, 2
        %v1031 = vrot.slane %v1028, 3
        %v1036 = vadd.f32 %v1004, %v1028
        %v1037 = vadd.f32 %v1011, %v1029
        %v1038 = vadd.f32 %v1018, %v1030
        %v1039 = vadd.f32 %v1025, %v1031
        %v1040 = vmax.f32 %v1036, 0.0
        %v1041 = vmax.f32 %v1037, 0.0
        %v1042 = vmax.f32 %v1038, 0.0
        %v1043 = vmax.f32 %v1039, 0.0
        %s1044 = scalar_lea.vmem %s2, 16
        %v1045 = vld [vmem:[%s1044] sm:$0xf]
        %v1046 = vld [vmem:[%s1044 + $0x4] sm:$0xf]
        %v1047 = vld [vmem:[%s1044 + $0x8] sm:$0xf]
        %v1048 = vld [vmem:[%s1044 + $0xc] sm:$0xf]
        %1050 = vset.pattern.permute.xlu0 0
        %1051 = vperm.xlu0 %1050, %v1045
        %v1052 = vpop.permute.xlu0 %1051
        %1055 = vset.pattern.permute.xlu0 0
        %1056 = vperm.xlu0 %1055, %v1046
        %v1057 = vpop.permute.xlu0 %1056
        %1060 = vset.pattern.permute.xlu0 0
        %1061 = vperm.xlu0 %1060, %v1047
        %v1062 = vpop.permute.xlu0 %1061
        %1065 = vset.pattern.permute.xlu0 0
        %1066 = vperm.xlu0 %1065, %v1048
        %v1067 = vpop.permute.xlu0 %1066
        %v1073 = vrot.slane %v1041, 7
        %vm1074 = vcmask 1041409
        %v1075 = vsel %vm1074, %v1073, %v1040
        %v1076 = vrot.slane %v1042, 6
        %vm1077 = vcmask 1042434
        %v1078 = vsel %vm1077, %v1076, %v1075
        %v1079 = vrot.slane %v1043, 5
        %vm1080 = vcmask 1043459
        %v1081 = vsel %vm1080, %v1079, %v1078
        %v1083 = vmul.f32 %v1052, %v1081
        %v1084 = vmul.f32 %v1057, %v1081
        %v1085 = vmul.f32 %v1062, %v1081
        %v1086 = vmul.f32 %v1067, %v1081
        %v1087 = vsel %vm997, %v1083, 0.0
        %v1088 = vrot.slane %v1087, 4
        %v1089 = vadd.f32 %v1087, %v1088
        %v1090 = vrot.slane %v1089, 2
        %v1091 = vadd.f32 %v1089, %v1090
        %v1092 = vrot.slane %v1091, 1
        %v1093 = vadd.f32 %v1091, %v1092
        %v1094 = vsel %vm997, %v1084, 0.0
        %v1095 = vrot.slane %v1094, 4
        %v1096 = vadd.f32 %v1094, %v1095
        %v1097 = vrot.slane %v1096, 2
        %v1098 = vadd.f32 %v1096, %v1097
        %v1099 = vrot.slane %v1098, 1
        %v1100 = vadd.f32 %v1098, %v1099
        %v1101 = vsel %vm997, %v1085, 0.0
        %v1102 = vrot.slane %v1101, 4
        %v1103 = vadd.f32 %v1101, %v1102
        %v1104 = vrot.slane %v1103, 2
        %v1105 = vadd.f32 %v1103, %v1104
        %v1106 = vrot.slane %v1105, 1
        %v1107 = vadd.f32 %v1105, %v1106
        %v1108 = vsel %vm997, %v1086, 0.0
        %v1109 = vrot.slane %v1108, 4
        %v1110 = vadd.f32 %v1108, %v1109
        %v1111 = vrot.slane %v1110, 2
        %v1112 = vadd.f32 %v1110, %v1111
        %v1113 = vrot.slane %v1112, 1
        %v1114 = vadd.f32 %v1112, %v1113
        %1115 = vset.pattern.permute.xlu0 2
        %1116 = vperm.xlu0 %1115, %v252
        %v1117 = vpop.permute.xlu0 %1116
        %v1118 = vrot.slane %v1117, 1
        %v1119 = vrot.slane %v1117, 2
        %v1120 = vrot.slane %v1117, 3
        %v1125 = vadd.f32 %v1093, %v1117
        %v1126 = vadd.f32 %v1100, %v1118
        %v1127 = vadd.f32 %v1107, %v1119
        %v1128 = vadd.f32 %v1114, %v1120
        %v1129 = vmax.f32 %v1125, 0.0
        %v1130 = vmax.f32 %v1126, 0.0
        %v1131 = vmax.f32 %v1127, 0.0
        %v1132 = vmax.f32 %v1128, 0.0
        %s1133 = scalar_lea.vmem %s2, 32
        %v1134 = vld [vmem:[%s1133] sm:$0xf]
        %v1135 = vld [vmem:[%s1133 + $0x4] sm:$0xf]
        %v1136 = vld [vmem:[%s1133 + $0x8] sm:$0xf]
        %v1137 = vld [vmem:[%s1133 + $0xc] sm:$0xf]
        %1139 = vset.pattern.permute.xlu0 0
        %1140 = vperm.xlu0 %1139, %v1134
        %v1141 = vpop.permute.xlu0 %1140
        %1144 = vset.pattern.permute.xlu0 0
        %1145 = vperm.xlu0 %1144, %v1135
        %v1146 = vpop.permute.xlu0 %1145
        %1149 = vset.pattern.permute.xlu0 0
        %1150 = vperm.xlu0 %1149, %v1136
        %v1151 = vpop.permute.xlu0 %1150
        %1154 = vset.pattern.permute.xlu0 0
        %1155 = vperm.xlu0 %1154, %v1137
        %v1156 = vpop.permute.xlu0 %1155
        %v1162 = vrot.slane %v1130, 7
        %v1163 = vsel %vm1074, %v1162, %v1129
        %v1164 = vrot.slane %v1131, 6
        %v1165 = vsel %vm1077, %v1164, %v1163
        %v1166 = vrot.slane %v1132, 5
        %v1167 = vsel %vm1080, %v1166, %v1165
        %v1169 = vmul.f32 %v1141, %v1167
        %v1170 = vmul.f32 %v1146, %v1167
        %v1171 = vmul.f32 %v1151, %v1167
        %v1172 = vmul.f32 %v1156, %v1167
        %v1173 = vsel %vm997, %v1169, 0.0
        %v1174 = vrot.slane %v1173, 4
        %v1175 = vadd.f32 %v1173, %v1174
        %v1176 = vrot.slane %v1175, 2
        %v1177 = vadd.f32 %v1175, %v1176
        %v1178 = vrot.slane %v1177, 1
        %v1179 = vadd.f32 %v1177, %v1178
        %v1180 = vsel %vm997, %v1170, 0.0
        %v1181 = vrot.slane %v1180, 4
        %v1182 = vadd.f32 %v1180, %v1181
        %v1183 = vrot.slane %v1182, 2
        %v1184 = vadd.f32 %v1182, %v1183
        %v1185 = vrot.slane %v1184, 1
        %v1186 = vadd.f32 %v1184, %v1185
        %v1187 = vsel %vm997, %v1171, 0.0
        %v1188 = vrot.slane %v1187, 4
        %v1189 = vadd.f32 %v1187, %v1188
        %v1190 = vrot.slane %v1189, 2
        %v1191 = vadd.f32 %v1189, %v1190
        %v1192 = vrot.slane %v1191, 1
        %v1193 = vadd.f32 %v1191, %v1192
        %v1194 = vsel %vm997, %v1172, 0.0
        %v1195 = vrot.slane %v1194, 4
        %v1196 = vadd.f32 %v1194, %v1195
        %v1197 = vrot.slane %v1196, 2
        %v1198 = vadd.f32 %v1196, %v1197
        %v1199 = vrot.slane %v1198, 1
        %v1200 = vadd.f32 %v1198, %v1199
        %1201 = vset.pattern.permute.xlu0 3
        %1202 = vperm.xlu0 %1201, %v252
        %v1203 = vpop.permute.xlu0 %1202
        %v1204 = vrot.slane %v1203, 1
        %v1205 = vrot.slane %v1203, 2
        %v1206 = vrot.slane %v1203, 3
        %v1211 = vadd.f32 %v1179, %v1203
        %v1212 = vadd.f32 %v1186, %v1204
        %v1213 = vadd.f32 %v1193, %v1205
        %v1214 = vadd.f32 %v1200, %v1206
        %s1215 = scalar_lea.vmem %s2, 48
        %v1216 = vld [vmem:[%s1215] sm:$0xf]
        %v1217 = vld [vmem:[%s1215 + $0x4] sm:$0xf]
        %v1218 = vld [vmem:[%s1215 + $0x8] sm:$0xf]
        %v1219 = vld [vmem:[%s1215 + $0xc] sm:$0xf]
        %1221 = vset.pattern.permute.xlu0 0
        %1222 = vperm.xlu0 %1221, %v1216
        %v1223 = vpop.permute.xlu0 %1222
        %1226 = vset.pattern.permute.xlu0 0
        %1227 = vperm.xlu0 %1226, %v1217
        %v1228 = vpop.permute.xlu0 %1227
        %1231 = vset.pattern.permute.xlu0 0
        %1232 = vperm.xlu0 %1231, %v1218
        %v1233 = vpop.permute.xlu0 %1232
        %1236 = vset.pattern.permute.xlu0 0
        %1237 = vperm.xlu0 %1236, %v1219
        %v1238 = vpop.permute.xlu0 %1237
        %v1244 = vrot.slane %v1212, 7
        %v1245 = vsel %vm1074, %v1244, %v1211
        %v1246 = vrot.slane %v1213, 6
        %v1247 = vsel %vm1077, %v1246, %v1245
        %v1248 = vrot.slane %v1214, 5
        %v1249 = vsel %vm1080, %v1248, %v1247
        %v1251 = vmul.f32 %v1223, %v1249
        %v1252 = vmul.f32 %v1228, %v1249
        %v1253 = vmul.f32 %v1233, %v1249
        %v1254 = vmul.f32 %v1238, %v1249
        %v1255 = vsel %vm997, %v1251, 0.0
        %v1256 = vrot.slane %v1255, 4
        %v1257 = vadd.f32 %v1255, %v1256
        %v1258 = vrot.slane %v1257, 2
        %v1259 = vadd.f32 %v1257, %v1258
        %v1260 = vrot.slane %v1259, 1
        %v1261 = vadd.f32 %v1259, %v1260
        %v1262 = vsel %vm997, %v1252, 0.0
        %v1263 = vrot.slane %v1262, 4
        %v1264 = vadd.f32 %v1262, %v1263
        %v1265 = vrot.slane %v1264, 2
        %v1266 = vadd.f32 %v1264, %v1265
        %v1267 = vrot.slane %v1266, 1
        %v1268 = vadd.f32 %v1266, %v1267
        %v1269 = vsel %vm997, %v1253, 0.0
        %v1270 = vrot.slane %v1269, 4
        %v1271 = vadd.f32 %v1269, %v1270
        %v1272 = vrot.slane %v1271, 2
        %v1273 = vadd.f32 %v1271, %v1272
        %v1274 = vrot.slane %v1273, 1
        %v1275 = vadd.f32 %v1273, %v1274
        %v1276 = vsel %vm997, %v1254, 0.0
        %v1277 = vrot.slane %v1276, 4
        %v1278 = vadd.f32 %v1276, %v1277
        %v1279 = vrot.slane %v1278, 2
        %v1280 = vadd.f32 %v1278, %v1279
        %v1281 = vrot.slane %v1280, 1
        %v1282 = vadd.f32 %v1280, %v1281
        %1283 = vset.pattern.permute.xlu0 4
        %1284 = vperm.xlu0 %1283, %v252
        %v1285 = vpop.permute.xlu0 %1284
        %v1286 = vrot.slane %v1285, 1
        %v1287 = vrot.slane %v1285, 2
        %v1288 = vrot.slane %v1285, 3
        %v1293 = vadd.f32 %v1261, %v1285
        %v1294 = vadd.f32 %v1268, %v1286
        %v1295 = vadd.f32 %v1275, %v1287
        %v1296 = vadd.f32 %v1282, %v1288
        %v1297 = vmax.f32 %v1293, 0.0
        %v1298 = vmax.f32 %v1294, 0.0
        %v1299 = vmax.f32 %v1295, 0.0
        %v1300 = vmax.f32 %v1296, 0.0
        %s1301 = scalar_lea.vmem %s2, 64
        %v1302 = vld [vmem:[%s1301] sm:$0xf]
        %v1303 = vld [vmem:[%s1301 + $0x4] sm:$0xf]
        %v1304 = vld [vmem:[%s1301 + $0x8] sm:$0xf]
        %v1305 = vld [vmem:[%s1301 + $0xc] sm:$0xf]
        %1307 = vset.pattern.permute.xlu0 0
        %1308 = vperm.xlu0 %1307, %v1302
        %v1309 = vpop.permute.xlu0 %1308
        %1312 = vset.pattern.permute.xlu0 0
        %1313 = vperm.xlu0 %1312, %v1303
        %v1314 = vpop.permute.xlu0 %1313
        %1317 = vset.pattern.permute.xlu0 0
        %1318 = vperm.xlu0 %1317, %v1304
        %v1319 = vpop.permute.xlu0 %1318
        %1322 = vset.pattern.permute.xlu0 0
        %1323 = vperm.xlu0 %1322, %v1305
        %v1324 = vpop.permute.xlu0 %1323
        %v1330 = vrot.slane %v1298, 7
        %v1331 = vsel %vm1074, %v1330, %v1297
        %v1332 = vrot.slane %v1299, 6
        %v1333 = vsel %vm1077, %v1332, %v1331
        %v1334 = vrot.slane %v1300, 5
        %v1335 = vsel %vm1080, %v1334, %v1333
        %v1337 = vmul.f32 %v1309, %v1335
        %v1338 = vmul.f32 %v1314, %v1335
        %v1339 = vmul.f32 %v1319, %v1335
        %v1340 = vmul.f32 %v1324, %v1335
        %v1341 = vsel %vm997, %v1337, 0.0
        %v1342 = vrot.slane %v1341, 4
        %v1343 = vadd.f32 %v1341, %v1342
        %v1344 = vrot.slane %v1343, 2
        %v1345 = vadd.f32 %v1343, %v1344
        %v1346 = vrot.slane %v1345, 1
        %v1347 = vadd.f32 %v1345, %v1346
        %v1348 = vsel %vm997, %v1338, 0.0
        %v1349 = vrot.slane %v1348, 4
        %v1350 = vadd.f32 %v1348, %v1349
        %v1351 = vrot.slane %v1350, 2
        %v1352 = vadd.f32 %v1350, %v1351
        %v1353 = vrot.slane %v1352, 1
        %v1354 = vadd.f32 %v1352, %v1353
        %v1355 = vsel %vm997, %v1339, 0.0
        %v1356 = vrot.slane %v1355, 4
        %v1357 = vadd.f32 %v1355, %v1356
        %v1358 = vrot.slane %v1357, 2
        %v1359 = vadd.f32 %v1357, %v1358
        %v1360 = vrot.slane %v1359, 1
        %v1361 = vadd.f32 %v1359, %v1360
        %v1362 = vsel %vm997, %v1340, 0.0
        %v1363 = vrot.slane %v1362, 4
        %v1364 = vadd.f32 %v1362, %v1363
        %v1365 = vrot.slane %v1364, 2
        %v1366 = vadd.f32 %v1364, %v1365
        %v1367 = vrot.slane %v1366, 1
        %v1368 = vadd.f32 %v1366, %v1367
        %1369 = vset.pattern.permute.xlu0 5
        %1370 = vperm.xlu0 %1369, %v252
        %v1371 = vpop.permute.xlu0 %1370
        %v1372 = vrot.slane %v1371, 1
        %v1373 = vrot.slane %v1371, 2
        %v1374 = vrot.slane %v1371, 3
        %v1379 = vadd.f32 %v1347, %v1371
        %v1380 = vadd.f32 %v1354, %v1372
        %v1381 = vadd.f32 %v1361, %v1373
        %v1382 = vadd.f32 %v1368, %v1374
        %v1383 = vmax.f32 %v1379, 0.0
        %v1384 = vmax.f32 %v1380, 0.0
        %v1385 = vmax.f32 %v1381, 0.0
        %v1386 = vmax.f32 %v1382, 0.0
        %s1387 = scalar_lea.vmem %s2, 80
        %v1388 = vld [vmem:[%s1387] sm:$0xf]
        %v1389 = vld [vmem:[%s1387 + $0x4] sm:$0xf]
        %v1390 = vld [vmem:[%s1387 + $0x8] sm:$0xf]
        %v1391 = vld [vmem:[%s1387 + $0xc] sm:$0xf]
        %1393 = vset.pattern.permute.xlu0 0
        %1394 = vperm.xlu0 %1393, %v1388
        %v1395 = vpop.permute.xlu0 %1394
        %1398 = vset.pattern.permute.xlu0 0
        %1399 = vperm.xlu0 %1398, %v1389
        %v1400 = vpop.permute.xlu0 %1399
        %1403 = vset.pattern.permute.xlu0 0
        %1404 = vperm.xlu0 %1403, %v1390
        %v1405 = vpop.permute.xlu0 %1404
        %1408 = vset.pattern.permute.xlu0 0
        %1409 = vperm.xlu0 %1408, %v1391
        %v1410 = vpop.permute.xlu0 %1409
        %v1416 = vrot.slane %v1384, 7
        %v1417 = vsel %vm1074, %v1416, %v1383
        %v1418 = vrot.slane %v1385, 6
        %v1419 = vsel %vm1077, %v1418, %v1417
        %v1420 = vrot.slane %v1386, 5
        %v1421 = vsel %vm1080, %v1420, %v1419
        %v1423 = vmul.f32 %v1395, %v1421
        %v1424 = vmul.f32 %v1400, %v1421
        %v1425 = vmul.f32 %v1405, %v1421
        %v1426 = vmul.f32 %v1410, %v1421
        %v1427 = vsel %vm997, %v1423, 0.0
        %v1428 = vrot.slane %v1427, 4
        %v1429 = vadd.f32 %v1427, %v1428
        %v1430 = vrot.slane %v1429, 2
        %v1431 = vadd.f32 %v1429, %v1430
        %v1432 = vrot.slane %v1431, 1
        %v1433 = vadd.f32 %v1431, %v1432
        %v1434 = vsel %vm997, %v1424, 0.0
        %v1435 = vrot.slane %v1434, 4
        %v1436 = vadd.f32 %v1434, %v1435
        %v1437 = vrot.slane %v1436, 2
        %v1438 = vadd.f32 %v1436, %v1437
        %v1439 = vrot.slane %v1438, 1
        %v1440 = vadd.f32 %v1438, %v1439
        %v1441 = vsel %vm997, %v1425, 0.0
        %v1442 = vrot.slane %v1441, 4
        %v1443 = vadd.f32 %v1441, %v1442
        %v1444 = vrot.slane %v1443, 2
        %v1445 = vadd.f32 %v1443, %v1444
        %v1446 = vrot.slane %v1445, 1
        %v1447 = vadd.f32 %v1445, %v1446
        %v1448 = vsel %vm997, %v1426, 0.0
        %v1449 = vrot.slane %v1448, 4
        %v1450 = vadd.f32 %v1448, %v1449
        %v1451 = vrot.slane %v1450, 2
        %v1452 = vadd.f32 %v1450, %v1451
        %v1453 = vrot.slane %v1452, 1
        %v1454 = vadd.f32 %v1452, %v1453
        %1455 = vset.pattern.permute.xlu0 6
        %1456 = vperm.xlu0 %1455, %v252
        %v1457 = vpop.permute.xlu0 %1456
        %v1458 = vrot.slane %v1457, 1
        %v1459 = vrot.slane %v1457, 2
        %v1460 = vrot.slane %v1457, 3
        %v1465 = vadd.f32 %v1433, %v1457
        %v1466 = vadd.f32 %v1440, %v1458
        %v1467 = vadd.f32 %v1447, %v1459
        %v1468 = vadd.f32 %v1454, %v1460
        %v1469 = vmax.f32 %v1465, 0.0
        %v1470 = vmax.f32 %v1466, 0.0
        %v1471 = vmax.f32 %v1467, 0.0
        %v1472 = vmax.f32 %v1468, 0.0
        %v1473 = vld [vmem:[%s4] sm:$0xff]
        %v1474 = vld [vmem:[%s4 + $0x8] sm:$0xff]
        %v1475 = vld [vmem:[%s4 + $0x10] sm:$0xff]
        %v1476 = vld [vmem:[%s4 + $0x18] sm:$0xff]
        %v1477 = vld [vmem:[%s5] sm:$0xff]
        %v1478 = vld [vmem:[%s5 + $0x8] sm:$0xff]
        %v1479 = vld [vmem:[%s5 + $0x10] sm:$0xff]
        %v1480 = vld [vmem:[%s5 + $0x18] sm:$0xff]
        %1482 = vset.pattern.permute.xlu0 0
        %1483 = vperm.xlu0 %1482, %v1477
        %v1484 = vpop.permute.xlu0 %1483
        %1487 = vset.pattern.permute.xlu0 0
        %1488 = vperm.xlu0 %1487, %v1478
        %v1489 = vpop.permute.xlu0 %1488
        %1492 = vset.pattern.permute.xlu0 0
        %1493 = vperm.xlu0 %1492, %v1479
        %v1494 = vpop.permute.xlu0 %1493
        %1497 = vset.pattern.permute.xlu0 0
        %1498 = vperm.xlu0 %1497, %v1480
        %v1499 = vpop.permute.xlu0 %1498
        %v1505 = vrot.slane %v1470, 7
        %v1506 = vsel %vm1074, %v1505, %v1469
        %v1507 = vrot.slane %v1471, 6
        %v1508 = vsel %vm1077, %v1507, %v1506
        %v1509 = vrot.slane %v1472, 5
        %v1510 = vsel %vm1080, %v1509, %v1508
        %vm1511 = vcmask 31744
        %v1513 = vsel %vm1511, %v1473, 0
        %v1516 = vsel %vm1511, %v1474, 0
        %v1519 = vsel %vm1511, %v1475, 0
        %v1522 = vsel %vm1511, %v1476, 0
        %v1524 = vsel %vm997, %v1510, 0
        %1526 = vmatprep.subr.mxu0 0.0
        %1527 = vmatpush1.msra.mxu0 0.0
        %1528 = vmatprep.subr.mxu0 0.0
        %1529 = vmatpush1.msra.mxu0 0.0
        %1530 = vmatprep.subr.mxu0 0.0
        %1531 = vmatpush1.msra.mxu0 0.0
        %1532 = vmatprep.subr.mxu0 0.0
        %1533 = vmatpush1.msra.mxu0 0.0
        %1534 = vmatprep.subr.mxu0 0.0
        %1535 = vmatpush1.msra.mxu0 0.0
        %1536 = vmatprep.subr.mxu0 0.0
        %1537 = vmatpush1.msra.mxu0 0.0
        %1538 = vmatprep.subr.mxu0 0.0
        %1539 = vmatpush1.msra.mxu0 0.0
        %1540 = vmatprep.subr.mxu0 0.0
        %1541 = vmatpush1.msra.mxu0 0.0
        %1542 = vmatprep.subr.mxu0 0.0
        %1543 = vmatpush1.msra.mxu0 0.0
        %1544 = vmatprep.subr.mxu0 0.0
        %1545 = vmatpush1.msra.mxu0 0.0
        %1546 = vmatprep.subr.mxu0 0.0
        %1547 = vmatpush1.msra.mxu0 0.0
        %1548 = vmatprep.subr.mxu0 0.0
        %1549 = vmatpush1.msra.mxu0 0.0
        %1550 = vmatprep.subr.mxu0 0.0
        %1551 = vmatpush1.msra.mxu0 0.0
        %1552 = vmatprep.subr.mxu0 0.0
        %1553 = vmatpush1.msra.mxu0 0.0
        %1554 = vmatprep.subr.mxu0 0.0
        %1555 = vmatpush1.msra.mxu0 0.0
        %1556 = vmatprep.subr.mxu0 0.0
        %v1557 = vand.u32 %v1524, 4294901760
        %1558 = vmatpush1.msra.mxu0 %v1557
        %1559 = vmatprep.subr.mxu0 0.0
        %1560 = vmatpush2.msra.mxu0 0.0
        %1561 = vmatprep.subr.mxu0 0.0
        %1562 = vmatpush2.msra.mxu0 0.0
        %1563 = vmatprep.subr.mxu0 0.0
        %1564 = vmatpush2.msra.mxu0 0.0
        %1565 = vmatprep.subr.mxu0 0.0
        %1566 = vmatpush2.msra.mxu0 0.0
        %1567 = vmatprep.subr.mxu0 0.0
        %1568 = vmatpush2.msra.mxu0 0.0
        %1569 = vmatprep.subr.mxu0 0.0
        %1570 = vmatpush2.msra.mxu0 0.0
        %1571 = vmatprep.subr.mxu0 0.0
        %1572 = vmatpush2.msra.mxu0 0.0
        %1573 = vmatprep.subr.mxu0 0.0
        %1574 = vmatpush2.msra.mxu0 0.0
        %1575 = vmatprep.subr.mxu0 0.0
        %1576 = vmatpush2.msra.mxu0 0.0
        %1577 = vmatprep.subr.mxu0 0.0
        %1578 = vmatpush2.msra.mxu0 0.0
        %1579 = vmatprep.subr.mxu0 0.0
        %1580 = vmatpush2.msra.mxu0 0.0
        %1581 = vmatprep.subr.mxu0 0.0
        %1582 = vmatpush2.msra.mxu0 0.0
        %1583 = vmatprep.subr.mxu0 0.0
        %1584 = vmatpush2.msra.mxu0 0.0
        %1585 = vmatprep.subr.mxu0 0.0
        %1586 = vmatpush2.msra.mxu0 0.0
        %1587 = vmatprep.subr.mxu0 0.0
        %1588 = vmatpush2.msra.mxu0 0.0
        %1589 = vmatprep.subr.mxu0 0.0
        %1590 = vmatpush2.msra.mxu0 0.0
        %1591 = vmatprep.mubr.f32.mxu0 0.0
        %v1592 = vand.u32 %v1513, 4294901760
        %v1593 = vsub.f32 %v1513, %v1592
        %v1594 = vand.u32 %v1593, 4294901760
        %v1595 = vsub.f32 %v1593, %v1594
        %v1596 = vand.u32 %v1595, 4294901760
        %1597 = vmatmul.mubr.f32.gmra.mxu0 %v1596
        %v1598 = vpop.f32.mrf.mxu0
        %v1599 = vadd.f32 %v1484, %v1598
        %v1600 = vpop.f32.mrf.mxu0
        %1601 = vmatprep.mubr.f32.mxu0 0.0
        %v1602 = vand.u32 %v1516, 4294901760
        %v1603 = vsub.f32 %v1516, %v1602
        %v1604 = vand.u32 %v1603, 4294901760
        %v1605 = vsub.f32 %v1603, %v1604
        %v1606 = vand.u32 %v1605, 4294901760
        %1607 = vmatmul.mubr.f32.gmra.mxu0 %v1606
        %v1608 = vpop.f32.mrf.mxu0
        %v1609 = vadd.f32 %v1489, %v1608
        %v1610 = vpop.f32.mrf.mxu0
        %1611 = vmatprep.mubr.f32.mxu0 0.0
        %v1612 = vand.u32 %v1519, 4294901760
        %v1613 = vsub.f32 %v1519, %v1612
        %v1614 = vand.u32 %v1613, 4294901760
        %v1615 = vsub.f32 %v1613, %v1614
        %v1616 = vand.u32 %v1615, 4294901760
        %1617 = vmatmul.mubr.f32.gmra.mxu0 %v1616
        %v1618 = vpop.f32.mrf.mxu0
        %v1619 = vadd.f32 %v1494, %v1618
        %v1620 = vpop.f32.mrf.mxu0
        %1621 = vmatprep.mubr.f32.mxu0 0.0
        %v1622 = vand.u32 %v1522, 4294901760
        %v1623 = vsub.f32 %v1522, %v1622
        %v1624 = vand.u32 %v1623, 4294901760
        %v1625 = vsub.f32 %v1623, %v1624
        %v1626 = vand.u32 %v1625, 4294901760
        %1627 = vmatmul.mubr.f32.gmra.mxu0 %v1626
        %v1628 = vpop.f32.mrf.mxu0
        %v1629 = vadd.f32 %v1499, %v1628
        %v1630 = vpop.f32.mrf.mxu0
        %1631 = vdwg.mxu0
        %1632 = vmatprep.subr.mxu0 0.0
        %1633 = vmatpush1.msra.mxu0 0.0
        %1634 = vmatprep.subr.mxu0 0.0
        %1635 = vmatpush1.msra.mxu0 0.0
        %1636 = vmatprep.subr.mxu0 0.0
        %1637 = vmatpush1.msra.mxu0 0.0
        %1638 = vmatprep.subr.mxu0 0.0
        %1639 = vmatpush1.msra.mxu0 0.0
        %1640 = vmatprep.subr.mxu0 0.0
        %1641 = vmatpush1.msra.mxu0 0.0
        %1642 = vmatprep.subr.mxu0 0.0
        %1643 = vmatpush1.msra.mxu0 0.0
        %1644 = vmatprep.subr.mxu0 0.0
        %1645 = vmatpush1.msra.mxu0 0.0
        %1646 = vmatprep.subr.mxu0 0.0
        %1647 = vmatpush1.msra.mxu0 0.0
        %1648 = vmatprep.subr.mxu0 0.0
        %1649 = vmatpush1.msra.mxu0 0.0
        %1650 = vmatprep.subr.mxu0 0.0
        %1651 = vmatpush1.msra.mxu0 0.0
        %1652 = vmatprep.subr.mxu0 0.0
        %1653 = vmatpush1.msra.mxu0 0.0
        %1654 = vmatprep.subr.mxu0 0.0
        %1655 = vmatpush1.msra.mxu0 0.0
        %1656 = vmatprep.subr.mxu0 0.0
        %1657 = vmatpush1.msra.mxu0 0.0
        %1658 = vmatprep.subr.mxu0 0.0
        %1659 = vmatpush1.msra.mxu0 0.0
        %1660 = vmatprep.subr.mxu0 0.0
        %1661 = vmatpush1.msra.mxu0 0.0
        %1662 = vmatprep.subr.mxu0 0.0
        %v1663 = vand.u32 %v1524, 4294901760
        %v1664 = vsub.f32 %v1524, %v1663
        %v1665 = vand.u32 %v1664, 4294901760
        %v1666 = vsub.f32 %v1664, %v1665
        %v1667 = vand.u32 %v1666, 4294901760
        %1668 = vmatpush1.msra.mxu0 %v1667
        %1669 = vmatprep.subr.mxu0 0.0
        %1670 = vmatpush2.msra.mxu0 0.0
        %1671 = vmatprep.subr.mxu0 0.0
        %1672 = vmatpush2.msra.mxu0 0.0
        %1673 = vmatprep.subr.mxu0 0.0
        %1674 = vmatpush2.msra.mxu0 0.0
        %1675 = vmatprep.subr.mxu0 0.0
        %1676 = vmatpush2.msra.mxu0 0.0
        %1677 = vmatprep.subr.mxu0 0.0
        %1678 = vmatpush2.msra.mxu0 0.0
        %1679 = vmatprep.subr.mxu0 0.0
        %1680 = vmatpush2.msra.mxu0 0.0
        %1681 = vmatprep.subr.mxu0 0.0
        %1682 = vmatpush2.msra.mxu0 0.0
        %1683 = vmatprep.subr.mxu0 0.0
        %1684 = vmatpush2.msra.mxu0 0.0
        %1685 = vmatprep.subr.mxu0 0.0
        %1686 = vmatpush2.msra.mxu0 0.0
        %1687 = vmatprep.subr.mxu0 0.0
        %1688 = vmatpush2.msra.mxu0 0.0
        %1689 = vmatprep.subr.mxu0 0.0
        %1690 = vmatpush2.msra.mxu0 0.0
        %1691 = vmatprep.subr.mxu0 0.0
        %1692 = vmatpush2.msra.mxu0 0.0
        %1693 = vmatprep.subr.mxu0 0.0
        %1694 = vmatpush2.msra.mxu0 0.0
        %1695 = vmatprep.subr.mxu0 0.0
        %1696 = vmatpush2.msra.mxu0 0.0
        %1697 = vmatprep.subr.mxu0 0.0
        %1698 = vmatpush2.msra.mxu0 0.0
        %1699 = vmatprep.subr.mxu0 0.0
        %1700 = vmatpush2.msra.mxu0 0.0
        %1701 = vmatprep.mubr.f32.mxu0 0.0
        %v1702 = vand.u32 %v1513, 4294901760
        %1703 = vmatmul.mubr.f32.gmra.mxu0 %v1702
        %v1704 = vpop.f32.mrf.mxu0
        %v1705 = vadd.f32 %v1599, %v1704
        %v1706 = vpop.f32.mrf.mxu0
        %1707 = vmatprep.mubr.f32.mxu0 0.0
        %v1708 = vand.u32 %v1516, 4294901760
        %1709 = vmatmul.mubr.f32.gmra.mxu0 %v1708
        %v1710 = vpop.f32.mrf.mxu0
        %v1711 = vadd.f32 %v1609, %v1710
        %v1712 = vpop.f32.mrf.mxu0
        %1713 = vmatprep.mubr.f32.mxu0 0.0
        %v1714 = vand.u32 %v1519, 4294901760
        %1715 = vmatmul.mubr.f32.gmra.mxu0 %v1714
        %v1716 = vpop.f32.mrf.mxu0
        %v1717 = vadd.f32 %v1619, %v1716
        %v1718 = vpop.f32.mrf.mxu0
        %1719 = vmatprep.mubr.f32.mxu0 0.0
        %v1720 = vand.u32 %v1522, 4294901760
        %1721 = vmatmul.mubr.f32.gmra.mxu0 %v1720
        %v1722 = vpop.f32.mrf.mxu0
        %v1723 = vadd.f32 %v1629, %v1722
        %v1724 = vpop.f32.mrf.mxu0
        %1725 = vdwg.mxu0
        %1726 = vmatprep.subr.mxu0 0.0
        %1727 = vmatpush1.msra.mxu0 0.0
        %1728 = vmatprep.subr.mxu0 0.0
        %1729 = vmatpush1.msra.mxu0 0.0
        %1730 = vmatprep.subr.mxu0 0.0
        %1731 = vmatpush1.msra.mxu0 0.0
        %1732 = vmatprep.subr.mxu0 0.0
        %1733 = vmatpush1.msra.mxu0 0.0
        %1734 = vmatprep.subr.mxu0 0.0
        %1735 = vmatpush1.msra.mxu0 0.0
        %1736 = vmatprep.subr.mxu0 0.0
        %1737 = vmatpush1.msra.mxu0 0.0
        %1738 = vmatprep.subr.mxu0 0.0
        %1739 = vmatpush1.msra.mxu0 0.0
        %1740 = vmatprep.subr.mxu0 0.0
        %1741 = vmatpush1.msra.mxu0 0.0
        %1742 = vmatprep.subr.mxu0 0.0
        %1743 = vmatpush1.msra.mxu0 0.0
        %1744 = vmatprep.subr.mxu0 0.0
        %1745 = vmatpush1.msra.mxu0 0.0
        %1746 = vmatprep.subr.mxu0 0.0
        %1747 = vmatpush1.msra.mxu0 0.0
        %1748 = vmatprep.subr.mxu0 0.0
        %1749 = vmatpush1.msra.mxu0 0.0
        %1750 = vmatprep.subr.mxu0 0.0
        %1751 = vmatpush1.msra.mxu0 0.0
        %1752 = vmatprep.subr.mxu0 0.0
        %1753 = vmatpush1.msra.mxu0 0.0
        %1754 = vmatprep.subr.mxu0 0.0
        %1755 = vmatpush1.msra.mxu0 0.0
        %1756 = vmatprep.subr.mxu0 0.0
        %v1757 = vand.u32 %v1524, 4294901760
        %v1758 = vsub.f32 %v1524, %v1757
        %1759 = vmatpush1.msra.mxu0 %v1758
        %1760 = vmatprep.subr.mxu0 0.0
        %1761 = vmatpush2.msra.mxu0 0.0
        %1762 = vmatprep.subr.mxu0 0.0
        %1763 = vmatpush2.msra.mxu0 0.0
        %1764 = vmatprep.subr.mxu0 0.0
        %1765 = vmatpush2.msra.mxu0 0.0
        %1766 = vmatprep.subr.mxu0 0.0
        %1767 = vmatpush2.msra.mxu0 0.0
        %1768 = vmatprep.subr.mxu0 0.0
        %1769 = vmatpush2.msra.mxu0 0.0
        %1770 = vmatprep.subr.mxu0 0.0
        %1771 = vmatpush2.msra.mxu0 0.0
        %1772 = vmatprep.subr.mxu0 0.0
        %1773 = vmatpush2.msra.mxu0 0.0
        %1774 = vmatprep.subr.mxu0 0.0
        %1775 = vmatpush2.msra.mxu0 0.0
        %1776 = vmatprep.subr.mxu0 0.0
        %1777 = vmatpush2.msra.mxu0 0.0
        %1778 = vmatprep.subr.mxu0 0.0
        %1779 = vmatpush2.msra.mxu0 0.0
        %1780 = vmatprep.subr.mxu0 0.0
        %1781 = vmatpush2.msra.mxu0 0.0
        %1782 = vmatprep.subr.mxu0 0.0
        %1783 = vmatpush2.msra.mxu0 0.0
        %1784 = vmatprep.subr.mxu0 0.0
        %1785 = vmatpush2.msra.mxu0 0.0
        %1786 = vmatprep.subr.mxu0 0.0
        %1787 = vmatpush2.msra.mxu0 0.0
        %1788 = vmatprep.subr.mxu0 0.0
        %1789 = vmatpush2.msra.mxu0 0.0
        %1790 = vmatprep.subr.mxu0 0.0
        %1791 = vmatpush2.msra.mxu0 0.0
        %1792 = vmatprep.mubr.f32.mxu0 0.0
        %v1793 = vand.u32 %v1513, 4294901760
        %v1794 = vsub.f32 %v1513, %v1793
        %1795 = vmatmul.mubr.f32.gmra.mxu0 %v1794
        %v1796 = vpop.f32.mrf.mxu0
        %v1797 = vadd.f32 %v1705, %v1796
        %v1798 = vpop.f32.mrf.mxu0
        %1799 = vmatprep.mubr.f32.mxu0 0.0
        %v1800 = vand.u32 %v1516, 4294901760
        %v1801 = vsub.f32 %v1516, %v1800
        %1802 = vmatmul.mubr.f32.gmra.mxu0 %v1801
        %v1803 = vpop.f32.mrf.mxu0
        %v1804 = vadd.f32 %v1711, %v1803
        %v1805 = vpop.f32.mrf.mxu0
        %1806 = vmatprep.mubr.f32.mxu0 0.0
        %v1807 = vand.u32 %v1519, 4294901760
        %v1808 = vsub.f32 %v1519, %v1807
        %1809 = vmatmul.mubr.f32.gmra.mxu0 %v1808
        %v1810 = vpop.f32.mrf.mxu0
        %v1811 = vadd.f32 %v1717, %v1810
        %v1812 = vpop.f32.mrf.mxu0
        %1813 = vmatprep.mubr.f32.mxu0 0.0
        %v1814 = vand.u32 %v1522, 4294901760
        %v1815 = vsub.f32 %v1522, %v1814
        %1816 = vmatmul.mubr.f32.gmra.mxu0 %v1815
        %v1817 = vpop.f32.mrf.mxu0
        %v1818 = vadd.f32 %v1723, %v1817
        %v1819 = vpop.f32.mrf.mxu0
        %1820 = vdwg.mxu0
        %1821 = vmatprep.subr.mxu0 0.0
        %1822 = vmatpush1.msra.mxu0 0.0
        %1823 = vmatprep.subr.mxu0 0.0
        %1824 = vmatpush1.msra.mxu0 0.0
        %1825 = vmatprep.subr.mxu0 0.0
        %1826 = vmatpush1.msra.mxu0 0.0
        %1827 = vmatprep.subr.mxu0 0.0
        %1828 = vmatpush1.msra.mxu0 0.0
        %1829 = vmatprep.subr.mxu0 0.0
        %1830 = vmatpush1.msra.mxu0 0.0
        %1831 = vmatprep.subr.mxu0 0.0
        %1832 = vmatpush1.msra.mxu0 0.0
        %1833 = vmatprep.subr.mxu0 0.0
        %1834 = vmatpush1.msra.mxu0 0.0
        %1835 = vmatprep.subr.mxu0 0.0
        %1836 = vmatpush1.msra.mxu0 0.0
        %1837 = vmatprep.subr.mxu0 0.0
        %1838 = vmatpush1.msra.mxu0 0.0
        %1839 = vmatprep.subr.mxu0 0.0
        %1840 = vmatpush1.msra.mxu0 0.0
        %1841 = vmatprep.subr.mxu0 0.0
        %1842 = vmatpush1.msra.mxu0 0.0
        %1843 = vmatprep.subr.mxu0 0.0
        %1844 = vmatpush1.msra.mxu0 0.0
        %1845 = vmatprep.subr.mxu0 0.0
        %1846 = vmatpush1.msra.mxu0 0.0
        %1847 = vmatprep.subr.mxu0 0.0
        %1848 = vmatpush1.msra.mxu0 0.0
        %1849 = vmatprep.subr.mxu0 0.0
        %1850 = vmatpush1.msra.mxu0 0.0
        %1851 = vmatprep.subr.mxu0 0.0
        %v1852 = vand.u32 %v1524, 4294901760
        %1853 = vmatpush1.msra.mxu0 %v1852
        %1854 = vmatprep.subr.mxu0 0.0
        %1855 = vmatpush2.msra.mxu0 0.0
        %1856 = vmatprep.subr.mxu0 0.0
        %1857 = vmatpush2.msra.mxu0 0.0
        %1858 = vmatprep.subr.mxu0 0.0
        %1859 = vmatpush2.msra.mxu0 0.0
        %1860 = vmatprep.subr.mxu0 0.0
        %1861 = vmatpush2.msra.mxu0 0.0
        %1862 = vmatprep.subr.mxu0 0.0
        %1863 = vmatpush2.msra.mxu0 0.0
        %1864 = vmatprep.subr.mxu0 0.0
        %1865 = vmatpush2.msra.mxu0 0.0
        %1866 = vmatprep.subr.mxu0 0.0
        %1867 = vmatpush2.msra.mxu0 0.0
        %1868 = vmatprep.subr.mxu0 0.0
        %1869 = vmatpush2.msra.mxu0 0.0
        %1870 = vmatprep.subr.mxu0 0.0
        %1871 = vmatpush2.msra.mxu0 0.0
        %1872 = vmatprep.subr.mxu0 0.0
        %1873 = vmatpush2.msra.mxu0 0.0
        %1874 = vmatprep.subr.mxu0 0.0
        %1875 = vmatpush2.msra.mxu0 0.0
        %1876 = vmatprep.subr.mxu0 0.0
        %1877 = vmatpush2.msra.mxu0 0.0
        %1878 = vmatprep.subr.mxu0 0.0
        %1879 = vmatpush2.msra.mxu0 0.0
        %1880 = vmatprep.subr.mxu0 0.0
        %1881 = vmatpush2.msra.mxu0 0.0
        %1882 = vmatprep.subr.mxu0 0.0
        %1883 = vmatpush2.msra.mxu0 0.0
        %1884 = vmatprep.subr.mxu0 0.0
        %1885 = vmatpush2.msra.mxu0 0.0
        %1886 = vmatprep.mubr.f32.mxu0 0.0
        %v1887 = vand.u32 %v1513, 4294901760
        %v1888 = vsub.f32 %v1513, %v1887
        %v1889 = vand.u32 %v1888, 4294901760
        %1890 = vmatmul.mubr.f32.gmra.mxu0 %v1889
        %v1891 = vpop.f32.mrf.mxu0
        %v1892 = vadd.f32 %v1797, %v1891
        %v1893 = vpop.f32.mrf.mxu0
        %1894 = vmatprep.mubr.f32.mxu0 0.0
        %v1895 = vand.u32 %v1516, 4294901760
        %v1896 = vsub.f32 %v1516, %v1895
        %v1897 = vand.u32 %v1896, 4294901760
        %1898 = vmatmul.mubr.f32.gmra.mxu0 %v1897
        %v1899 = vpop.f32.mrf.mxu0
        %v1900 = vadd.f32 %v1804, %v1899
        %v1901 = vpop.f32.mrf.mxu0
        %1902 = vmatprep.mubr.f32.mxu0 0.0
        %v1903 = vand.u32 %v1519, 4294901760
        %v1904 = vsub.f32 %v1519, %v1903
        %v1905 = vand.u32 %v1904, 4294901760
        %1906 = vmatmul.mubr.f32.gmra.mxu0 %v1905
        %v1907 = vpop.f32.mrf.mxu0
        %v1908 = vadd.f32 %v1811, %v1907
        %v1909 = vpop.f32.mrf.mxu0
        %1910 = vmatprep.mubr.f32.mxu0 0.0
        %v1911 = vand.u32 %v1522, 4294901760
        %v1912 = vsub.f32 %v1522, %v1911
        %v1913 = vand.u32 %v1912, 4294901760
        %1914 = vmatmul.mubr.f32.gmra.mxu0 %v1913
        %v1915 = vpop.f32.mrf.mxu0
        %v1916 = vadd.f32 %v1818, %v1915
        %v1917 = vpop.f32.mrf.mxu0
        %1918 = vdwg.mxu0
        %1919 = vmatprep.subr.mxu0 0.0
        %1920 = vmatpush1.msra.mxu0 0.0
        %1921 = vmatprep.subr.mxu0 0.0
        %1922 = vmatpush1.msra.mxu0 0.0
        %1923 = vmatprep.subr.mxu0 0.0
        %1924 = vmatpush1.msra.mxu0 0.0
        %1925 = vmatprep.subr.mxu0 0.0
        %1926 = vmatpush1.msra.mxu0 0.0
        %1927 = vmatprep.subr.mxu0 0.0
        %1928 = vmatpush1.msra.mxu0 0.0
        %1929 = vmatprep.subr.mxu0 0.0
        %1930 = vmatpush1.msra.mxu0 0.0
        %1931 = vmatprep.subr.mxu0 0.0
        %1932 = vmatpush1.msra.mxu0 0.0
        %1933 = vmatprep.subr.mxu0 0.0
        %1934 = vmatpush1.msra.mxu0 0.0
        %1935 = vmatprep.subr.mxu0 0.0
        %1936 = vmatpush1.msra.mxu0 0.0
        %1937 = vmatprep.subr.mxu0 0.0
        %1938 = vmatpush1.msra.mxu0 0.0
        %1939 = vmatprep.subr.mxu0 0.0
        %1940 = vmatpush1.msra.mxu0 0.0
        %1941 = vmatprep.subr.mxu0 0.0
        %1942 = vmatpush1.msra.mxu0 0.0
        %1943 = vmatprep.subr.mxu0 0.0
        %1944 = vmatpush1.msra.mxu0 0.0
        %1945 = vmatprep.subr.mxu0 0.0
        %1946 = vmatpush1.msra.mxu0 0.0
        %1947 = vmatprep.subr.mxu0 0.0
        %1948 = vmatpush1.msra.mxu0 0.0
        %1949 = vmatprep.subr.mxu0 0.0
        %v1950 = vand.u32 %v1524, 4294901760
        %v1951 = vsub.f32 %v1524, %v1950
        %v1952 = vand.u32 %v1951, 4294901760
        %1953 = vmatpush1.msra.mxu0 %v1952
        %1954 = vmatprep.subr.mxu0 0.0
        %1955 = vmatpush2.msra.mxu0 0.0
        %1956 = vmatprep.subr.mxu0 0.0
        %1957 = vmatpush2.msra.mxu0 0.0
        %1958 = vmatprep.subr.mxu0 0.0
        %1959 = vmatpush2.msra.mxu0 0.0
        %1960 = vmatprep.subr.mxu0 0.0
        %1961 = vmatpush2.msra.mxu0 0.0
        %1962 = vmatprep.subr.mxu0 0.0
        %1963 = vmatpush2.msra.mxu0 0.0
        %1964 = vmatprep.subr.mxu0 0.0
        %1965 = vmatpush2.msra.mxu0 0.0
        %1966 = vmatprep.subr.mxu0 0.0
        %1967 = vmatpush2.msra.mxu0 0.0
        %1968 = vmatprep.subr.mxu0 0.0
        %1969 = vmatpush2.msra.mxu0 0.0
        %1970 = vmatprep.subr.mxu0 0.0
        %1971 = vmatpush2.msra.mxu0 0.0
        %1972 = vmatprep.subr.mxu0 0.0
        %1973 = vmatpush2.msra.mxu0 0.0
        %1974 = vmatprep.subr.mxu0 0.0
        %1975 = vmatpush2.msra.mxu0 0.0
        %1976 = vmatprep.subr.mxu0 0.0
        %1977 = vmatpush2.msra.mxu0 0.0
        %1978 = vmatprep.subr.mxu0 0.0
        %1979 = vmatpush2.msra.mxu0 0.0
        %1980 = vmatprep.subr.mxu0 0.0
        %1981 = vmatpush2.msra.mxu0 0.0
        %1982 = vmatprep.subr.mxu0 0.0
        %1983 = vmatpush2.msra.mxu0 0.0
        %1984 = vmatprep.subr.mxu0 0.0
        %1985 = vmatpush2.msra.mxu0 0.0
        %1986 = vmatprep.mubr.f32.mxu0 0.0
        %v1987 = vand.u32 %v1513, 4294901760
        %1988 = vmatmul.mubr.f32.gmra.mxu0 %v1987
        %v1989 = vpop.f32.mrf.mxu0
        %v1990 = vadd.f32 %v1892, %v1989
        %v1991 = vpop.f32.mrf.mxu0
        %1992 = vmatprep.mubr.f32.mxu0 0.0
        %v1993 = vand.u32 %v1516, 4294901760
        %1994 = vmatmul.mubr.f32.gmra.mxu0 %v1993
        %v1995 = vpop.f32.mrf.mxu0
        %v1996 = vadd.f32 %v1900, %v1995
        %v1997 = vpop.f32.mrf.mxu0
        %1998 = vmatprep.mubr.f32.mxu0 0.0
        %v1999 = vand.u32 %v1519, 4294901760
        %2000 = vmatmul.mubr.f32.gmra.mxu0 %v1999
        %v2001 = vpop.f32.mrf.mxu0
        %v2002 = vadd.f32 %v1908, %v2001
        %v2003 = vpop.f32.mrf.mxu0
        %2004 = vmatprep.mubr.f32.mxu0 0.0
        %v2005 = vand.u32 %v1522, 4294901760
        %2006 = vmatmul.mubr.f32.gmra.mxu0 %v2005
        %v2007 = vpop.f32.mrf.mxu0
        %v2008 = vadd.f32 %v1916, %v2007
        %v2009 = vpop.f32.mrf.mxu0
        %2010 = vdwg.mxu0
        %2011 = vmatprep.subr.mxu0 0.0
        %2012 = vmatpush1.msra.mxu0 0.0
        %2013 = vmatprep.subr.mxu0 0.0
        %2014 = vmatpush1.msra.mxu0 0.0
        %2015 = vmatprep.subr.mxu0 0.0
        %2016 = vmatpush1.msra.mxu0 0.0
        %2017 = vmatprep.subr.mxu0 0.0
        %2018 = vmatpush1.msra.mxu0 0.0
        %2019 = vmatprep.subr.mxu0 0.0
        %2020 = vmatpush1.msra.mxu0 0.0
        %2021 = vmatprep.subr.mxu0 0.0
        %2022 = vmatpush1.msra.mxu0 0.0
        %2023 = vmatprep.subr.mxu0 0.0
        %2024 = vmatpush1.msra.mxu0 0.0
        %2025 = vmatprep.subr.mxu0 0.0
        %2026 = vmatpush1.msra.mxu0 0.0
        %2027 = vmatprep.subr.mxu0 0.0
        %2028 = vmatpush1.msra.mxu0 0.0
        %2029 = vmatprep.subr.mxu0 0.0
        %2030 = vmatpush1.msra.mxu0 0.0
        %2031 = vmatprep.subr.mxu0 0.0
        %2032 = vmatpush1.msra.mxu0 0.0
        %2033 = vmatprep.subr.mxu0 0.0
        %2034 = vmatpush1.msra.mxu0 0.0
        %2035 = vmatprep.subr.mxu0 0.0
        %2036 = vmatpush1.msra.mxu0 0.0
        %2037 = vmatprep.subr.mxu0 0.0
        %2038 = vmatpush1.msra.mxu0 0.0
        %2039 = vmatprep.subr.mxu0 0.0
        %2040 = vmatpush1.msra.mxu0 0.0
        %2041 = vmatprep.subr.mxu0 0.0
        %v2042 = vand.u32 %v1524, 4294901760
        %2043 = vmatpush1.msra.mxu0 %v2042
        %2044 = vmatprep.subr.mxu0 0.0
        %2045 = vmatpush2.msra.mxu0 0.0
        %2046 = vmatprep.subr.mxu0 0.0
        %2047 = vmatpush2.msra.mxu0 0.0
        %2048 = vmatprep.subr.mxu0 0.0
        %2049 = vmatpush2.msra.mxu0 0.0
        %2050 = vmatprep.subr.mxu0 0.0
        %2051 = vmatpush2.msra.mxu0 0.0
        %2052 = vmatprep.subr.mxu0 0.0
        %2053 = vmatpush2.msra.mxu0 0.0
        %2054 = vmatprep.subr.mxu0 0.0
        %2055 = vmatpush2.msra.mxu0 0.0
        %2056 = vmatprep.subr.mxu0 0.0
        %2057 = vmatpush2.msra.mxu0 0.0
        %2058 = vmatprep.subr.mxu0 0.0
        %2059 = vmatpush2.msra.mxu0 0.0
        %2060 = vmatprep.subr.mxu0 0.0
        %2061 = vmatpush2.msra.mxu0 0.0
        %2062 = vmatprep.subr.mxu0 0.0
        %2063 = vmatpush2.msra.mxu0 0.0
        %2064 = vmatprep.subr.mxu0 0.0
        %2065 = vmatpush2.msra.mxu0 0.0
        %2066 = vmatprep.subr.mxu0 0.0
        %2067 = vmatpush2.msra.mxu0 0.0
        %2068 = vmatprep.subr.mxu0 0.0
        %2069 = vmatpush2.msra.mxu0 0.0
        %2070 = vmatprep.subr.mxu0 0.0
        %2071 = vmatpush2.msra.mxu0 0.0
        %2072 = vmatprep.subr.mxu0 0.0
        %2073 = vmatpush2.msra.mxu0 0.0
        %2074 = vmatprep.subr.mxu0 0.0
        %2075 = vmatpush2.msra.mxu0 0.0
        %2076 = vmatprep.mubr.f32.mxu0 0.0
        %v2077 = vand.u32 %v1513, 4294901760
        %2078 = vmatmul.mubr.f32.gmra.mxu0 %v2077
        %v2079 = vpop.f32.mrf.mxu0
        %v2080 = vadd.f32 %v1990, %v2079
        %v2081 = vpop.f32.mrf.mxu0
        %2082 = vmatprep.mubr.f32.mxu0 0.0
        %v2083 = vand.u32 %v1516, 4294901760
        %2084 = vmatmul.mubr.f32.gmra.mxu0 %v2083
        %v2085 = vpop.f32.mrf.mxu0
        %v2086 = vadd.f32 %v1996, %v2085
        %v2087 = vpop.f32.mrf.mxu0
        %2088 = vmatprep.mubr.f32.mxu0 0.0
        %v2089 = vand.u32 %v1519, 4294901760
        %2090 = vmatmul.mubr.f32.gmra.mxu0 %v2089
        %v2091 = vpop.f32.mrf.mxu0
        %v2092 = vadd.f32 %v2002, %v2091
        %v2093 = vpop.f32.mrf.mxu0
        %2094 = vmatprep.mubr.f32.mxu0 0.0
        %v2095 = vand.u32 %v1522, 4294901760
        %2096 = vmatmul.mubr.f32.gmra.mxu0 %v2095
        %v2097 = vpop.f32.mrf.mxu0
        %v2098 = vadd.f32 %v2008, %v2097
        %v2099 = vpop.f32.mrf.mxu0
        %2100 = vdwg.mxu0
        %2101 = vst [vmem:[%s245] sm:$0xff] %v2080
        %2102 = vst [vmem:[%s245 + $0x8] sm:$0xff] %v2086
        %2103 = vst [vmem:[%s245 + $0x10] sm:$0xff] %v2092
        %2104 = vst [vmem:[%s245 + $0x18] sm:$0xff] %v2098
        %s2105 = sand.u32 %s159, 1
        %s2106 = scalar_lea.sflag [#allocation3], %s2105
        %s2107 = sand.u32 %s159, 1
        %s2108 = smul.addr %s2107, 32
        %s2109 = scalar_lea.vmem [#allocation2], %s2108
        // Predicated region
        $region45: #{tpu_custom_call.1} parent=43 // pred_check
          %p2110 = pneg %p169
        $region46: #{tpu_custom_call.1} parent=43 // pred_check_branch
          %2112 = sbr.rel (%p2110) target = $region48
        $region47: #{tpu_custom_call.1} parent=43 // pred_region
          %s2114 = ssub.s32 512, 512
          %2115 = vsyncadd %s2106, %s2114
          %s2116 = smul.addr %s20, 128
          %s2117 = scalar_lea.hbm %s6, %s2116
          %s2118 = sshll.u32 %s2109, 4
          %s2119 = int_to_ptr.vmem [resolvable:$true] %s2118
          %2124 = dma.vmem_to_hbm [thread:$0]  %s2119, 512, %s2117, %s2106, 128, 256, 8
        $region48: #{tpu_custom_call.1} parent=43 // pred_fallthru
          _
      $region44: #{tpu_custom_call.1} parent=5 // pred_fallthru
        _
      %p2125 = scmp.le.s32.totalorder 2, %s15
      // Predicated region
      $region49: #{tpu_custom_call.1} parent=5 // pred_check
        %p2126 = pneg %p2125
      $region50: #{tpu_custom_call.1} parent=5 // pred_check_branch
        %2128 = sbr.rel (%p2126) target = $region52
      $region51: #{tpu_custom_call.1} parent=5 // pred_region
        %s2129 = ssub.s32 %s15, 2
        // Predicated region
        $region53: #{tpu_custom_call.1} parent=51 // pred_check
          %p2130 = pneg %p175
        $region54: #{tpu_custom_call.1} parent=51 // pred_check_branch
          %2132 = sbr.rel (%p2130) target = $region56
        $region55: #{tpu_custom_call.1} parent=51 // pred_region
          %s2133 = sand.u32 %s160, 1
          %s2134 = scalar_lea.sflag [#allocation3], %s2133
          %s2135 = sand.u32 %s160, 1
          %s2136 = smul.addr %s2135, 32
          %s2137 = scalar_lea.vmem [#allocation2], %s2136
          %2138 = dma.done %s2134, 512
        $region56: #{tpu_custom_call.1} parent=51 // pred_fallthru
          _
      $region52: #{tpu_custom_call.1} parent=5 // pred_fallthru
        _
    $region6: #{tpu_custom_call.1} parent=1 // loop_footer
      %s19 = sadd.s32 1, %s15
    $region7: #{tpu_custom_call.1} parent=1 // loop_footer_branch
      %14 = sbr.rel target = $region3
    $region8: #{tpu_custom_call.1} parent=1 // loop_exit
      _
    %2139 = vsyncpa [#allocation3], 1
    %s2140 = scalar_lea.sflag [#allocation3], 1
    %2141 = vsyncpa %s2140, 1

</llo_original>
